<compile_context>
chip_gen: v5e
topology: v5e:2x2
jax: 0.10.0
libtpu: 0.0.40
codegen_flags: <defaults>
</compile_context>

<pallas_src>
import functools

import jax
import jax.numpy as jnp
from jax.experimental import pallas as pl
from jax.experimental.pallas import tpu as pltpu


def _vmem_budget_bytes():
    """Generation-aware VMEM budget: ~75% of physical, capped at 96 MiB."""
    cap = 64 * 1024 * 1024
    try:
        info = pltpu.get_tpu_info()
        cap = int(getattr(info, "vmem_capacity_bytes", cap))
    except Exception:
        pass
    return int(min((cap * 3) // 4, 96 * 1024 * 1024))


def _choose_window_chunk(W, Cin, Gp, itemsize, budget_bytes, cout):
    """Windows per grid step: as many as fit comfortably in VMEM (bounded unroll)."""
    sub = 16 if itemsize == 2 else 8
    cin_pad = ((Cin + sub - 1) // sub) * sub          # sublane padding of the x tile
    cout_pad = max(((cout + 7) // 8) * 8, 8)
    # Resident output + 2 wide f32 accumulators + chunk-local values/spills + slack.
    fixed = 6 * cout_pad * Gp * 4 + (2 << 20)
    avail = max(budget_bytes - fixed, 2 << 20)
    per_window = max(cin_pad * Gp * itemsize, 1)
    wt = avail // (4 * per_window)                    # double-buffered x, use <= half
    wt = min(wt, (8 << 20) // per_window)             # keep per-step block <= ~8 MiB
    wt = min(wt, W, 64)                               # bound trace/unroll size
    return max(int(wt), 1)


def _fused_conv_bn_gem_kernel(x_ref, w_ref, par_ref, o_ref,
                              smax_acc, wsum_acc, ssq_acc,
                              *, c1, wt, num_win, num_win_half, valid_cols):
    """Fused 1x1 Conv + BatchNorm2d (training batch stats) + GeM, both branches.

    Grid axis 0 = window-chunk index (reduction axis, "arbitrary").
      x_ref   : (Wt, Cin, Gp)  bf16 - this chunk's windows (lane-dense).
      w_ref   : (Cout, Cin)    bf16 - concatenated conv1/conv2 1x1 weights.
      par_ref : (4, Cout, 1)   f32  - [gamma, beta, sigmoid(p), sign(gamma)].
      o_ref   : (Cout, Gp)     f32  - pooled output, written on the last chunk.
    Scratch (persist across grid steps):
      smax_acc : (Cout, Gp) f32 - running max over windows of sign(gamma)*y.
      wsum_acc : (Cout, Gp) f32 - running sum over (active) windows of y.
      ssq_acc  : (Cout, 1)  f32 - running BN sum of squares.
    """
    chunk = pl.program_id(0)
    cout, gp = o_ref.shape
    row = jax.lax.broadcasted_iota(jnp.int32, (cout, 1), 0)
    # Active-window count per channel: branch-1 rows see all windows,
    # branch-2 rows (>= c1) only the first neighbor//2 windows.
    nw_i = jnp.where(row < c1, num_win, num_win_half)            # (Cout, 1) int32

    # ---- init accumulators on the first chunk --------------------------------
    @pl.when(chunk == 0)
    def _init():
        smax_acc[...] = jnp.full(smax_acc.shape, -jnp.inf, dtype=smax_acc.dtype)
        wsum_acc[...] = jnp.zeros(wsum_acc.shape, dtype=wsum_acc.dtype)
        ssq_acc[...] = jnp.zeros(ssq_acc.shape, dtype=ssq_acc.dtype)

    w_mat = w_ref[...]                                           # (Cout, Cin)
    sgn = par_ref[3]                                             # sign(gamma), (Cout,1)

    # ---- chunk-local accumulation (registers / compiler-managed spill) --------
    smax_l = jnp.full((cout, gp), -jnp.inf, dtype=jnp.float32)
    wsum_l = jnp.zeros((cout, gp), dtype=jnp.float32)
    ssq_l = jnp.zeros((cout, 1), dtype=jnp.float32)
    for t in range(wt):                                          # static unroll
        gw = chunk * wt + t                                      # global window index
        # 1x1 conv for this window (bias omitted: cancelled by training-mode BN).
        y = jnp.dot(w_mat, x_ref[t], preferred_element_type=jnp.float32)
        active = gw < nw_i                                       # (Cout,1) bool
        act_f = active.astype(jnp.float32)
        smax_l = jnp.maximum(smax_l, jnp.where(active, sgn * y, -jnp.inf))
        wsum_l = wsum_l + act_f * y
        ssq_l = ssq_l + act_f * jnp.sum(y * y, axis=1, keepdims=True)

    # One wide RMW per accumulator per CHUNK (amortized over wt windows).
    smax_acc[...] = jnp.maximum(smax_acc[...], smax_l)
    wsum_acc[...] = wsum_acc[...] + wsum_l
    ssq_acc[...] = ssq_acc[...] + ssq_l

    # ---- finalize on the last chunk: BN affine + GeM gating -------------------
    @pl.when(chunk == pl.num_programs(0) - 1)
    def _finalize():
        gamma = par_ref[0]
        beta = par_ref[1]
        wg = par_ref[2]                                          # sigmoid(p)
        nw = nw_i.astype(jnp.float32)
        m = nw * jnp.float32(valid_cols)                         # true elem count
        # BN sum recovered from the (gated, zero-padded) window-sum accumulator.
        ssum = jnp.sum(wsum_acc[...], axis=1, keepdims=True)
        mean = ssum / m
        var = jnp.maximum(ssq_acc[...] / m - mean * mean, 0.0)   # biased var, >= 0
        a = gamma * jax.lax.rsqrt(var + 1e-5)
        b = beta - mean * a
        # BN is affine, so it commutes with the window max:
        #   max_w(a*y+b) = (sign(gamma)*a) * max_w(sign(gamma)*y) + b.
        pool_max = (sgn * a) * smax_acc[...] + b
        pool_avg = a * (wsum_acc[...] / nw) + b
        o_ref[...] = (pool_max * wg + pool_avg * (1.0 - wg)).astype(o_ref.dtype)


def conv_aspp_forward(x, params, compute_dtype=jnp.bfloat16):
    """Conv_ASPP forward (ASPP_type=1): returns (B, outplanes, N)."""
    B, Cin, N, W = x.shape
    assert W >= 2, "Conv_ASPP (ASPP_type=1) requires neighbor >= 2"
    Wh = W // 2
    w1, _b1, g1, be1, p1 = params["conv1"]
    w2, _b2, g2, be2, p2 = params["conv2"]
    c1, c2 = w1.shape[0], w2.shape[0]
    Cout = c1 + c2
    G = B * N
    Gp = max(128, ((G + 127) // 128) * 128)           # lane axis -> multiple of 128

    budget = _vmem_budget_bytes()
    itemsize = jnp.dtype(compute_dtype).itemsize
    Wt = _choose_window_chunk(W, Cin, Gp, itemsize, budget, Cout)
    n_chunks = -(-W // Wt)
    Wp = n_chunks * Wt

    # ---- layout glue: cast to compute dtype FIRST (halves relayout bytes),
    # then window-major (W, Cin, B*N) so each grid step DMAs one contiguous
    # (Wt, Cin, B*N) slab.  Zero-padded lanes contribute exactly 0 to all BN
    # sums; zero-padded windows are masked inactive in-kernel. ----------------
    x_t = jnp.transpose(x.astype(compute_dtype), (3, 1, 0, 2)).reshape(W, Cin, G)
    if Gp != G or Wp != W:
        x_t = jnp.pad(x_t, ((0, Wp - W), (0, 0), (0, Gp - G)))

    # Fused per-branch parameters (channel rows ordered [conv1, conv2]).
    w_mat = jnp.concatenate([w1.reshape(c1, Cin), w2.reshape(c2, Cin)],
                            axis=0).astype(compute_dtype)            # (Cout, Cin)
    gamma = jnp.concatenate([g1, g2]).astype(jnp.float32)
    beta = jnp.concatenate([be1, be2]).astype(jnp.float32)
    wg1 = jax.nn.sigmoid(p1.astype(jnp.float32))[0]
    wg2 = jax.nn.sigmoid(p2.astype(jnp.float32))[0]
    wg = jnp.concatenate([jnp.full((c1,), wg1), jnp.full((c2,), wg2)])
    sgn = jnp.sign(gamma)
    # Single packed parameter input: [gamma, beta, sigmoid(p), sign(gamma)].
    par = jnp.stack([gamma, beta, wg, sgn], axis=0)[:, :, None].astype(jnp.float32)
    # (conv biases _b1/_b2 intentionally unused: cancelled by training-mode BN)

    kernel = functools.partial(_fused_conv_bn_gem_kernel, c1=c1, wt=Wt,
                               num_win=W, num_win_half=Wh, valid_cols=G)

    pooled = pl.pallas_call(
        kernel,
        out_shape=jax.ShapeDtypeStruct((Cout, Gp), jnp.float32),
        grid_spec=pltpu.PrefetchScalarGridSpec(
            num_scalar_prefetch=0,
            grid=(n_chunks,),                                        # window chunks
            in_specs=[
                pl.BlockSpec((Wt, Cin, Gp), lambda i: (i, 0, 0)),    # x chunk
                pl.BlockSpec((Cout, Cin), lambda i: (0, 0)),         # conv weights
                pl.BlockSpec((4, Cout, 1), lambda i: (0, 0, 0)),     # packed params
            ],
            out_specs=pl.BlockSpec((Cout, Gp), lambda i: (0, 0)),    # resident output
            scratch_shapes=[
                pltpu.VMEM((Cout, Gp), jnp.float32),   # running signed max
                pltpu.VMEM((Cout, Gp), jnp.float32),   # running window-sum
                pltpu.VMEM((Cout, 1), jnp.float32),    # BN sum of squares
            ]),
        compiler_params=pltpu.CompilerParams(
            dimension_semantics=("arbitrary",),        # window axis is a reduction
            vmem_limit_bytes=budget),
    )(x_t, w_mat, par)

    # (Cout, Gp) -> drop lane padding -> (B, Cout, N); channel rows are already
    # in [conv1, conv2] order, i.e. the torch.cat((out1, out2), 1) order.
    out = pooled[:, :G].reshape(Cout, B, N)
    return jnp.transpose(out, (1, 0, 2))


# ------------------------- pure-JAX reference (for checking) -------------------------
def _ref_branch(x_nchw, weight, bias, gamma, beta, p, compute_dtype=jnp.float32):
    Cout = weight.shape[0]
    xq = x_nchw.astype(compute_dtype).astype(jnp.float32)
    wq = weight.reshape(Cout, -1).astype(compute_dtype).astype(jnp.float32)
    y = jnp.einsum("bcnw,oc->bonw", xq, wq) + bias[None, :, None, None]
    mean = jnp.mean(y, axis=(0, 2, 3), keepdims=True)
    var = jnp.var(y, axis=(0, 2, 3), keepdims=True)
    yhat = (y - mean) * jax.lax.rsqrt(var + 1e-5)
    yhat = yhat * gamma[None, :, None, None] + beta[None, :, None, None]
    w = jax.nn.sigmoid(p)[0]
    return yhat.max(axis=-1) * w + yhat.mean(axis=-1) * (1.0 - w)


def _ref_forward(x, params, compute_dtype=jnp.float32):
    B, C, N, neighbor = x.shape
    out1 = _ref_branch(x, *params["conv1"], compute_dtype=compute_dtype)
    out2 = _ref_branch(x[:, :, :, 0:neighbor // 2], *params["conv2"],
                       compute_dtype=compute_dtype)
    return jnp.concatenate([out1, out2], axis=1)


if __name__ == "__main__":
    B, inplanes, N, neighbor = 2, 4, 16, 16
    outplanes = 8
    c1 = outplanes - outplanes // 2        # conv1 out channels
    c2 = outplanes // 2                    # conv2 out channels

    key = jax.random.PRNGKey(0)
    kx, kw1, kb1, kw2, kb2 = jax.random.split(key, 5)
    x = jax.random.normal(kx, (B, inplanes, N, neighbor), jnp.float32)

    params = {
        "conv1": (
            jax.random.normal(kw1, (c1, inplanes, 1, 1), jnp.float32) * 0.2,  # conv weight
            jax.random.normal(kb1, (c1,), jnp.float32) * 0.1,                 # conv bias
            jnp.ones((c1,), jnp.float32),                                     # BN gamma
            jnp.zeros((c1,), jnp.float32),                                    # BN beta
            jnp.zeros((1,), jnp.float32),                                     # GeM p
        ),
        "conv2": (
            jax.random.normal(kw2, (c2, inplanes, 1, 1), jnp.float32) * 0.2,
            jax.random.normal(kb2, (c2,), jnp.float32) * 0.1,
            jnp.ones((c2,), jnp.float32),
            jnp.zeros((c2,), jnp.float32),
            jnp.zeros((1,), jnp.float32),
        ),
    }

    out = jax.jit(conv_aspp_forward)(x, params)
    out = jax.block_until_ready(out)
    assert out.shape == (B, outplanes, N), out.shape

    # Tight check vs. a reference that uses the same bf16 quantization of x/W
    # (isolates kernel math from the deliberate bf16 input cast).
    ref_q = _ref_forward(x, params, compute_dtype=jnp.bfloat16)
    err_q = float(jnp.max(jnp.abs(out - ref_q)))
    assert jnp.allclose(out, ref_q, atol=2e-3, rtol=2e-3), err_q

    # Loose sanity check vs. the full-f32 PyTorch-equivalent reference.
    ref = _ref_forward(x, params, compute_dtype=jnp.float32)
    err = float(jnp.max(jnp.abs(out - ref)))
    assert jnp.allclose(out, ref, atol=1e-1, rtol=1e-1), err

    print("KERNEL_OK")
</pallas_src>

<mosaic_0001>
module attributes {stable_mosaic.version = 11 : i64} {
  func.func @_fused_conv_bn_gem_kernel(%arg0: i32, %arg1: memref<16x4x128xbf16, #tpu.memory_space<vmem>>, %arg2: memref<8x4xbf16, #tpu.memory_space<vmem>>, %arg3: memref<4x8x1xf32, #tpu.memory_space<vmem>>, %arg4: memref<8x128xf32, #tpu.memory_space<vmem>>, %arg5: memref<8x128xf32, #tpu.memory_space<vmem>>, %arg6: memref<8x128xf32, #tpu.memory_space<vmem>>, %arg7: memref<8x1xf32, #tpu.memory_space<vmem>>) attributes {dimension_semantics = [#tpu.dimension_semantics<arbitrary>], iteration_bounds = array<i64: 1>, scalar_prefetch = 0 : i64, scratch_operands = 3 : i64, tpu.core_type = #tpu.core_type<tc>, window_params = [{transform_indices = @transform_0, window_bounds = array<i64: 16, 4, 128>}, {pipeline_mode = #tpu.pipeline_mode<synchronous>, transform_indices = @transform_1, window_bounds = array<i64: 8, 4>}, {pipeline_mode = #tpu.pipeline_mode<synchronous>, transform_indices = @transform_2, window_bounds = array<i64: 4, 8, 1>}, {pipeline_mode = #tpu.pipeline_mode<synchronous>, transform_indices = @transform_3, window_bounds = array<i64: 8, 128>}]} {
    %0 = tpu.iota {dimensions = array<i32: 0>} : vector<8x1xi32>
    %c4_i32 = arith.constant 4 : i32
    %1 = vector.broadcast %c4_i32 : i32 to vector<8x1xi32>
    %2 = arith.cmpi slt, %0, %1 : vector<8x1xi32>
    %c16_i32 = arith.constant 16 : i32
    %c8_i32 = arith.constant 8 : i32
    %3 = vector.broadcast %c16_i32 : i32 to vector<8x1xi32>
    %4 = vector.broadcast %c8_i32 : i32 to vector<8x1xi32>
    %5 = arith.select %2, %3, %4 : vector<8x1xi1>, vector<8x1xi32>
    %c0_i32 = arith.constant 0 : i32
    %6 = arith.cmpi eq, %arg0, %c0_i32 : i32
    %7 = arith.extui %6 : i1 to i32
    %c0_i32_0 = arith.constant 0 : i32
    %8 = arith.cmpi ne, %7, %c0_i32_0 : i32
    scf.if %8 {
      %cst_121 = arith.constant 0xFF800000 : f32
      %411 = vector.broadcast %cst_121 : f32 to vector<8x128xf32>
      %c0_122 = arith.constant 0 : index
      %c0_123 = arith.constant 0 : index
      %412 = vector.load %arg5[%c0_122, %c0_123] : memref<8x128xf32, #tpu.memory_space<vmem>>, vector<8x128xf32>
      tpu.vector_store %arg5[%c0_122, %c0_123], %411 {strides = array<i32>} : memref<8x128xf32, #tpu.memory_space<vmem>>, vector<8x128xf32>,
      %cst_124 = arith.constant 0.000000e+00 : f32
      %413 = vector.broadcast %cst_124 : f32 to vector<8x128xf32>
      %c0_125 = arith.constant 0 : index
      %c0_126 = arith.constant 0 : index
      %414 = vector.load %arg6[%c0_125, %c0_126] : memref<8x128xf32, #tpu.memory_space<vmem>>, vector<8x128xf32>
      tpu.vector_store %arg6[%c0_125, %c0_126], %413 {strides = array<i32>} : memref<8x128xf32, #tpu.memory_space<vmem>>, vector<8x128xf32>,
      %cst_127 = arith.constant 0.000000e+00 : f32
      %415 = vector.broadcast %cst_127 : f32 to vector<8x1xf32>
      %c0_128 = arith.constant 0 : index
      %c0_129 = arith.constant 0 : index
      %416 = vector.load %arg7[%c0_128, %c0_129] : memref<8x1xf32, #tpu.memory_space<vmem>>, vector<8x1xf32>
      tpu.vector_store %arg7[%c0_128, %c0_129], %415 {strides = array<i32>} : memref<8x1xf32, #tpu.memory_space<vmem>>, vector<8x1xf32>,
    } else {
    }
    %c0 = arith.constant 0 : index
    %c0_1 = arith.constant 0 : index
    %9 = vector.load %arg2[%c0, %c0_1] : memref<8x4xbf16, #tpu.memory_space<vmem>>, vector<8x4xbf16>
    %c3 = arith.constant 3 : index
    %c0_2 = arith.constant 0 : index
    %c0_3 = arith.constant 0 : index
    %10 = vector.load %arg3[%c3, %c0_2, %c0_3] : memref<4x8x1xf32, #tpu.memory_space<vmem>>, vector<1x8x1xf32>
    %11 = vector.shape_cast %10 : vector<1x8x1xf32> to vector<8x1xf32>
    %cst = arith.constant 0xFF800000 : f32
    %12 = vector.broadcast %cst : f32 to vector<8x128xf32>
    %cst_4 = arith.constant 0.000000e+00 : f32
    %13 = vector.broadcast %cst_4 : f32 to vector<8x128xf32>
    %cst_5 = arith.constant 0.000000e+00 : f32
    %14 = vector.broadcast %cst_5 : f32 to vector<8x1xf32>
    %c16_i32_6 = arith.constant 16 : i32
    %15 = arith.muli %arg0, %c16_i32_6 : i32
    %c0_i32_7 = arith.constant 0 : i32
    %16 = arith.addi %15, %c0_i32_7 : i32
    %c0_8 = arith.constant 0 : index
    %c0_9 = arith.constant 0 : index
    %c0_10 = arith.constant 0 : index
    %17 = vector.load %arg1[%c0_8, %c0_9, %c0_10] : memref<16x4x128xbf16, #tpu.memory_space<vmem>>, vector<1x4x128xbf16>
    %18 = vector.shape_cast %17 : vector<1x4x128xbf16> to vector<4x128xbf16>
    %cst_11 = arith.constant dense<0.000000e+00> : vector<8x128xf32>
    %19 = tpu.matmul %9, %18, %cst_11 {dimension_numbers = #tpu.dot_dimension_numbers<[1], [0], [0], [1], [0, 0, 1, 1], [], []>} : vector<8x4xbf16>, vector<4x128xbf16>, vector<8x128xf32> -> vector<8x128xf32>
    %20 = vector.broadcast %16 : i32 to vector<8x1xi32>
    %21 = arith.cmpi slt, %20, %5 : vector<8x1xi32>
    %22 = arith.extui %21 : vector<8x1xi1> to vector<8x1xi32>
    %23 = arith.sitofp %22 : vector<8x1xi32> to vector<8x1xf32>
    %24 = vector.broadcast %11 : vector<8x1xf32> to vector<8x128xf32>
    %25 = arith.mulf %24, %19 : vector<8x128xf32>
    %cst_12 = arith.constant 0xFF800000 : f32
    %26 = vector.shape_cast %21 : vector<8x1xi1> to vector<8x1xi1>
    %27 = vector.broadcast %26 : vector<8x1xi1> to vector<8x128xi1>
    %28 = vector.broadcast %cst_12 : f32 to vector<8x128xf32>
    %29 = arith.select %27, %25, %28 : vector<8x128xi1>, vector<8x128xf32>
    %30 = arith.maximumf %12, %29 : vector<8x128xf32>
    %31 = vector.broadcast %23 : vector<8x1xf32> to vector<8x128xf32>
    %32 = arith.mulf %31, %19 : vector<8x128xf32>
    %33 = arith.addf %13, %32 : vector<8x128xf32>
    %34 = arith.mulf %19, %19 : vector<8x128xf32>
    %cst_13 = arith.constant dense<0.000000e+00> : vector<8xf32>
    %35 = vector.multi_reduction <add>, %34, %cst_13 [1] : vector<8x128xf32> to vector<8xf32>
    %36 = vector.shape_cast %35 : vector<8xf32> to vector<8x1xf32>
    %37 = arith.mulf %23, %36 : vector<8x1xf32>
    %38 = arith.addf %14, %37 : vector<8x1xf32>
    %c16_i32_14 = arith.constant 16 : i32
    %39 = arith.muli %arg0, %c16_i32_14 : i32
    %c1_i32 = arith.constant 1 : i32
    %40 = arith.addi %39, %c1_i32 : i32
    %c1 = arith.constant 1 : index
    %c0_15 = arith.constant 0 : index
    %c0_16 = arith.constant 0 : index
    %41 = vector.load %arg1[%c1, %c0_15, %c0_16] : memref<16x4x128xbf16, #tpu.memory_space<vmem>>, vector<1x4x128xbf16>
    %42 = vector.shape_cast %41 : vector<1x4x128xbf16> to vector<4x128xbf16>
    %cst_17 = arith.constant dense<0.000000e+00> : vector<8x128xf32>
    %43 = tpu.matmul %9, %42, %cst_17 {dimension_numbers = #tpu.dot_dimension_numbers<[1], [0], [0], [1], [0, 0, 1, 1], [], []>} : vector<8x4xbf16>, vector<4x128xbf16>, vector<8x128xf32> -> vector<8x128xf32>
    %44 = vector.broadcast %40 : i32 to vector<8x1xi32>
    %45 = arith.cmpi slt, %44, %5 : vector<8x1xi32>
    %46 = arith.extui %45 : vector<8x1xi1> to vector<8x1xi32>
    %47 = arith.sitofp %46 : vector<8x1xi32> to vector<8x1xf32>
    %48 = vector.broadcast %11 : vector<8x1xf32> to vector<8x128xf32>
    %49 = arith.mulf %48, %43 : vector<8x128xf32>
    %cst_18 = arith.constant 0xFF800000 : f32
    %50 = vector.shape_cast %45 : vector<8x1xi1> to vector<8x1xi1>
    %51 = vector.broadcast %50 : vector<8x1xi1> to vector<8x128xi1>
    %52 = vector.broadcast %cst_18 : f32 to vector<8x128xf32>
    %53 = arith.select %51, %49, %52 : vector<8x128xi1>, vector<8x128xf32>
    %54 = arith.maximumf %30, %53 : vector<8x128xf32>
    %55 = vector.broadcast %47 : vector<8x1xf32> to vector<8x128xf32>
    %56 = arith.mulf %55, %43 : vector<8x128xf32>
    %57 = arith.addf %33, %56 : vector<8x128xf32>
    %58 = arith.mulf %43, %43 : vector<8x128xf32>
    %cst_19 = arith.constant dense<0.000000e+00> : vector<8xf32>
    %59 = vector.multi_reduction <add>, %58, %cst_19 [1] : vector<8x128xf32> to vector<8xf32>
    %60 = vector.shape_cast %59 : vector<8xf32> to vector<8x1xf32>
    %61 = arith.mulf %47, %60 : vector<8x1xf32>
    %62 = arith.addf %38, %61 : vector<8x1xf32>
    %c16_i32_20 = arith.constant 16 : i32
    %63 = arith.muli %arg0, %c16_i32_20 : i32
    %c2_i32 = arith.constant 2 : i32
    %64 = arith.addi %63, %c2_i32 : i32
    %c2 = arith.constant 2 : index
    %c0_21 = arith.constant 0 : index
    %c0_22 = arith.constant 0 : index
    %65 = vector.load %arg1[%c2, %c0_21, %c0_22] : memref<16x4x128xbf16, #tpu.memory_space<vmem>>, vector<1x4x128xbf16>
    %66 = vector.shape_cast %65 : vector<1x4x128xbf16> to vector<4x128xbf16>
    %cst_23 = arith.constant dense<0.000000e+00> : vector<8x128xf32>
    %67 = tpu.matmul %9, %66, %cst_23 {dimension_numbers = #tpu.dot_dimension_numbers<[1], [0], [0], [1], [0, 0, 1, 1], [], []>} : vector<8x4xbf16>, vector<4x128xbf16>, vector<8x128xf32> -> vector<8x128xf32>
    %68 = vector.broadcast %64 : i32 to vector<8x1xi32>
    %69 = arith.cmpi slt, %68, %5 : vector<8x1xi32>
    %70 = arith.extui %69 : vector<8x1xi1> to vector<8x1xi32>
    %71 = arith.sitofp %70 : vector<8x1xi32> to vector<8x1xf32>
    %72 = vector.broadcast %11 : vector<8x1xf32> to vector<8x128xf32>
    %73 = arith.mulf %72, %67 : vector<8x128xf32>
    %cst_24 = arith.constant 0xFF800000 : f32
    %74 = vector.shape_cast %69 : vector<8x1xi1> to vector<8x1xi1>
    %75 = vector.broadcast %74 : vector<8x1xi1> to vector<8x128xi1>
    %76 = vector.broadcast %cst_24 : f32 to vector<8x128xf32>
    %77 = arith.select %75, %73, %76 : vector<8x128xi1>, vector<8x128xf32>
    %78 = arith.maximumf %54, %77 : vector<8x128xf32>
    %79 = vector.broadcast %71 : vector<8x1xf32> to vector<8x128xf32>
    %80 = arith.mulf %79, %67 : vector<8x128xf32>
    %81 = arith.addf %57, %80 : vector<8x128xf32>
    %82 = arith.mulf %67, %67 : vector<8x128xf32>
    %cst_25 = arith.constant dense<0.000000e+00> : vector<8xf32>
    %83 = vector.multi_reduction <add>, %82, %cst_25 [1] : vector<8x128xf32> to vector<8xf32>
    %84 = vector.shape_cast %83 : vector<8xf32> to vector<8x1xf32>
    %85 = arith.mulf %71, %84 : vector<8x1xf32>
    %86 = arith.addf %62, %85 : vector<8x1xf32>
    %c16_i32_26 = arith.constant 16 : i32
    %87 = arith.muli %arg0, %c16_i32_26 : i32
    %c3_i32 = arith.constant 3 : i32
    %88 = arith.addi %87, %c3_i32 : i32
    %c3_27 = arith.constant 3 : index
    %c0_28 = arith.constant 0 : index
    %c0_29 = arith.constant 0 : index
    %89 = vector.load %arg1[%c3_27, %c0_28, %c0_29] : memref<16x4x128xbf16, #tpu.memory_space<vmem>>, vector<1x4x128xbf16>
    %90 = vector.shape_cast %89 : vector<1x4x128xbf16> to vector<4x128xbf16>
    %cst_30 = arith.constant dense<0.000000e+00> : vector<8x128xf32>
    %91 = tpu.matmul %9, %90, %cst_30 {dimension_numbers = #tpu.dot_dimension_numbers<[1], [0], [0], [1], [0, 0, 1, 1], [], []>} : vector<8x4xbf16>, vector<4x128xbf16>, vector<8x128xf32> -> vector<8x128xf32>
    %92 = vector.broadcast %88 : i32 to vector<8x1xi32>
    %93 = arith.cmpi slt, %92, %5 : vector<8x1xi32>
    %94 = arith.extui %93 : vector<8x1xi1> to vector<8x1xi32>
    %95 = arith.sitofp %94 : vector<8x1xi32> to vector<8x1xf32>
    %96 = vector.broadcast %11 : vector<8x1xf32> to vector<8x128xf32>
    %97 = arith.mulf %96, %91 : vector<8x128xf32>
    %cst_31 = arith.constant 0xFF800000 : f32
    %98 = vector.shape_cast %93 : vector<8x1xi1> to vector<8x1xi1>
    %99 = vector.broadcast %98 : vector<8x1xi1> to vector<8x128xi1>
    %100 = vector.broadcast %cst_31 : f32 to vector<8x128xf32>
    %101 = arith.select %99, %97, %100 : vector<8x128xi1>, vector<8x128xf32>
    %102 = arith.maximumf %78, %101 : vector<8x128xf32>
    %103 = vector.broadcast %95 : vector<8x1xf32> to vector<8x128xf32>
    %104 = arith.mulf %103, %91 : vector<8x128xf32>
    %105 = arith.addf %81, %104 : vector<8x128xf32>
    %106 = arith.mulf %91, %91 : vector<8x128xf32>
    %cst_32 = arith.constant dense<0.000000e+00> : vector<8xf32>
    %107 = vector.multi_reduction <add>, %106, %cst_32 [1] : vector<8x128xf32> to vector<8xf32>
    %108 = vector.shape_cast %107 : vector<8xf32> to vector<8x1xf32>
    %109 = arith.mulf %95, %108 : vector<8x1xf32>
    %110 = arith.addf %86, %109 : vector<8x1xf32>
    %c16_i32_33 = arith.constant 16 : i32
    %111 = arith.muli %arg0, %c16_i32_33 : i32
    %c4_i32_34 = arith.constant 4 : i32
    %112 = arith.addi %111, %c4_i32_34 : i32
    %c4 = arith.constant 4 : index
    %c0_35 = arith.constant 0 : index
    %c0_36 = arith.constant 0 : index
    %113 = vector.load %arg1[%c4, %c0_35, %c0_36] : memref<16x4x128xbf16, #tpu.memory_space<vmem>>, vector<1x4x128xbf16>
    %114 = vector.shape_cast %113 : vector<1x4x128xbf16> to vector<4x128xbf16>
    %cst_37 = arith.constant dense<0.000000e+00> : vector<8x128xf32>
    %115 = tpu.matmul %9, %114, %cst_37 {dimension_numbers = #tpu.dot_dimension_numbers<[1], [0], [0], [1], [0, 0, 1, 1], [], []>} : vector<8x4xbf16>, vector<4x128xbf16>, vector<8x128xf32> -> vector<8x128xf32>
    %116 = vector.broadcast %112 : i32 to vector<8x1xi32>
    %117 = arith.cmpi slt, %116, %5 : vector<8x1xi32>
    %118 = arith.extui %117 : vector<8x1xi1> to vector<8x1xi32>
    %119 = arith.sitofp %118 : vector<8x1xi32> to vector<8x1xf32>
    %120 = vector.broadcast %11 : vector<8x1xf32> to vector<8x128xf32>
    %121 = arith.mulf %120, %115 : vector<8x128xf32>
    %cst_38 = arith.constant 0xFF800000 : f32
    %122 = vector.shape_cast %117 : vector<8x1xi1> to vector<8x1xi1>
    %123 = vector.broadcast %122 : vector<8x1xi1> to vector<8x128xi1>
    %124 = vector.broadcast %cst_38 : f32 to vector<8x128xf32>
    %125 = arith.select %123, %121, %124 : vector<8x128xi1>, vector<8x128xf32>
    %126 = arith.maximumf %102, %125 : vector<8x128xf32>
    %127 = vector.broadcast %119 : vector<8x1xf32> to vector<8x128xf32>
    %128 = arith.mulf %127, %115 : vector<8x128xf32>
    %129 = arith.addf %105, %128 : vector<8x128xf32>
    %130 = arith.mulf %115, %115 : vector<8x128xf32>
    %cst_39 = arith.constant dense<0.000000e+00> : vector<8xf32>
    %131 = vector.multi_reduction <add>, %130, %cst_39 [1] : vector<8x128xf32> to vector<8xf32>
    %132 = vector.shape_cast %131 : vector<8xf32> to vector<8x1xf32>
    %133 = arith.mulf %119, %132 : vector<8x1xf32>
    %134 = arith.addf %110, %133 : vector<8x1xf32>
    %c16_i32_40 = arith.constant 16 : i32
    %135 = arith.muli %arg0, %c16_i32_40 : i32
    %c5_i32 = arith.constant 5 : i32
    %136 = arith.addi %135, %c5_i32 : i32
    %c5 = arith.constant 5 : index
    %c0_41 = arith.constant 0 : index
    %c0_42 = arith.constant 0 : index
    %137 = vector.load %arg1[%c5, %c0_41, %c0_42] : memref<16x4x128xbf16, #tpu.memory_space<vmem>>, vector<1x4x128xbf16>
    %138 = vector.shape_cast %137 : vector<1x4x128xbf16> to vector<4x128xbf16>
    %cst_43 = arith.constant dense<0.000000e+00> : vector<8x128xf32>
    %139 = tpu.matmul %9, %138, %cst_43 {dimension_numbers = #tpu.dot_dimension_numbers<[1], [0], [0], [1], [0, 0, 1, 1], [], []>} : vector<8x4xbf16>, vector<4x128xbf16>, vector<8x128xf32> -> vector<8x128xf32>
    %140 = vector.broadcast %136 : i32 to vector<8x1xi32>
    %141 = arith.cmpi slt, %140, %5 : vector<8x1xi32>
    %142 = arith.extui %141 : vector<8x1xi1> to vector<8x1xi32>
    %143 = arith.sitofp %142 : vector<8x1xi32> to vector<8x1xf32>
    %144 = vector.broadcast %11 : vector<8x1xf32> to vector<8x128xf32>
    %145 = arith.mulf %144, %139 : vector<8x128xf32>
    %cst_44 = arith.constant 0xFF800000 : f32
    %146 = vector.shape_cast %141 : vector<8x1xi1> to vector<8x1xi1>
    %147 = vector.broadcast %146 : vector<8x1xi1> to vector<8x128xi1>
    %148 = vector.broadcast %cst_44 : f32 to vector<8x128xf32>
    %149 = arith.select %147, %145, %148 : vector<8x128xi1>, vector<8x128xf32>
    %150 = arith.maximumf %126, %149 : vector<8x128xf32>
    %151 = vector.broadcast %143 : vector<8x1xf32> to vector<8x128xf32>
    %152 = arith.mulf %151, %139 : vector<8x128xf32>
    %153 = arith.addf %129, %152 : vector<8x128xf32>
    %154 = arith.mulf %139, %139 : vector<8x128xf32>
    %cst_45 = arith.constant dense<0.000000e+00> : vector<8xf32>
    %155 = vector.multi_reduction <add>, %154, %cst_45 [1] : vector<8x128xf32> to vector<8xf32>
    %156 = vector.shape_cast %155 : vector<8xf32> to vector<8x1xf32>
    %157 = arith.mulf %143, %156 : vector<8x1xf32>
    %158 = arith.addf %134, %157 : vector<8x1xf32>
    %c16_i32_46 = arith.constant 16 : i32
    %159 = arith.muli %arg0, %c16_i32_46 : i32
    %c6_i32 = arith.constant 6 : i32
    %160 = arith.addi %159, %c6_i32 : i32
    %c6 = arith.constant 6 : index
    %c0_47 = arith.constant 0 : index
    %c0_48 = arith.constant 0 : index
    %161 = vector.load %arg1[%c6, %c0_47, %c0_48] : memref<16x4x128xbf16, #tpu.memory_space<vmem>>, vector<1x4x128xbf16>
    %162 = vector.shape_cast %161 : vector<1x4x128xbf16> to vector<4x128xbf16>
    %cst_49 = arith.constant dense<0.000000e+00> : vector<8x128xf32>
    %163 = tpu.matmul %9, %162, %cst_49 {dimension_numbers = #tpu.dot_dimension_numbers<[1], [0], [0], [1], [0, 0, 1, 1], [], []>} : vector<8x4xbf16>, vector<4x128xbf16>, vector<8x128xf32> -> vector<8x128xf32>
    %164 = vector.broadcast %160 : i32 to vector<8x1xi32>
    %165 = arith.cmpi slt, %164, %5 : vector<8x1xi32>
    %166 = arith.extui %165 : vector<8x1xi1> to vector<8x1xi32>
    %167 = arith.sitofp %166 : vector<8x1xi32> to vector<8x1xf32>
    %168 = vector.broadcast %11 : vector<8x1xf32> to vector<8x128xf32>
    %169 = arith.mulf %168, %163 : vector<8x128xf32>
    %cst_50 = arith.constant 0xFF800000 : f32
    %170 = vector.shape_cast %165 : vector<8x1xi1> to vector<8x1xi1>
    %171 = vector.broadcast %170 : vector<8x1xi1> to vector<8x128xi1>
    %172 = vector.broadcast %cst_50 : f32 to vector<8x128xf32>
    %173 = arith.select %171, %169, %172 : vector<8x128xi1>, vector<8x128xf32>
    %174 = arith.maximumf %150, %173 : vector<8x128xf32>
    %175 = vector.broadcast %167 : vector<8x1xf32> to vector<8x128xf32>
    %176 = arith.mulf %175, %163 : vector<8x128xf32>
    %177 = arith.addf %153, %176 : vector<8x128xf32>
    %178 = arith.mulf %163, %163 : vector<8x128xf32>
    %cst_51 = arith.constant dense<0.000000e+00> : vector<8xf32>
    %179 = vector.multi_reduction <add>, %178, %cst_51 [1] : vector<8x128xf32> to vector<8xf32>
    %180 = vector.shape_cast %179 : vector<8xf32> to vector<8x1xf32>
    %181 = arith.mulf %167, %180 : vector<8x1xf32>
    %182 = arith.addf %158, %181 : vector<8x1xf32>
    %c16_i32_52 = arith.constant 16 : i32
    %183 = arith.muli %arg0, %c16_i32_52 : i32
    %c7_i32 = arith.constant 7 : i32
    %184 = arith.addi %183, %c7_i32 : i32
    %c7 = arith.constant 7 : index
    %c0_53 = arith.constant 0 : index
    %c0_54 = arith.constant 0 : index
    %185 = vector.load %arg1[%c7, %c0_53, %c0_54] : memref<16x4x128xbf16, #tpu.memory_space<vmem>>, vector<1x4x128xbf16>
    %186 = vector.shape_cast %185 : vector<1x4x128xbf16> to vector<4x128xbf16>
    %cst_55 = arith.constant dense<0.000000e+00> : vector<8x128xf32>
    %187 = tpu.matmul %9, %186, %cst_55 {dimension_numbers = #tpu.dot_dimension_numbers<[1], [0], [0], [1], [0, 0, 1, 1], [], []>} : vector<8x4xbf16>, vector<4x128xbf16>, vector<8x128xf32> -> vector<8x128xf32>
    %188 = vector.broadcast %184 : i32 to vector<8x1xi32>
    %189 = arith.cmpi slt, %188, %5 : vector<8x1xi32>
    %190 = arith.extui %189 : vector<8x1xi1> to vector<8x1xi32>
    %191 = arith.sitofp %190 : vector<8x1xi32> to vector<8x1xf32>
    %192 = vector.broadcast %11 : vector<8x1xf32> to vector<8x128xf32>
    %193 = arith.mulf %192, %187 : vector<8x128xf32>
    %cst_56 = arith.constant 0xFF800000 : f32
    %194 = vector.shape_cast %189 : vector<8x1xi1> to vector<8x1xi1>
    %195 = vector.broadcast %194 : vector<8x1xi1> to vector<8x128xi1>
    %196 = vector.broadcast %cst_56 : f32 to vector<8x128xf32>
    %197 = arith.select %195, %193, %196 : vector<8x128xi1>, vector<8x128xf32>
    %198 = arith.maximumf %174, %197 : vector<8x128xf32>
    %199 = vector.broadcast %191 : vector<8x1xf32> to vector<8x128xf32>
    %200 = arith.mulf %199, %187 : vector<8x128xf32>
    %201 = arith.addf %177, %200 : vector<8x128xf32>
    %202 = arith.mulf %187, %187 : vector<8x128xf32>
    %cst_57 = arith.constant dense<0.000000e+00> : vector<8xf32>
    %203 = vector.multi_reduction <add>, %202, %cst_57 [1] : vector<8x128xf32> to vector<8xf32>
    %204 = vector.shape_cast %203 : vector<8xf32> to vector<8x1xf32>
    %205 = arith.mulf %191, %204 : vector<8x1xf32>
    %206 = arith.addf %182, %205 : vector<8x1xf32>
    %c16_i32_58 = arith.constant 16 : i32
    %207 = arith.muli %arg0, %c16_i32_58 : i32
    %c8_i32_59 = arith.constant 8 : i32
    %208 = arith.addi %207, %c8_i32_59 : i32
    %c8 = arith.constant 8 : index
    %c0_60 = arith.constant 0 : index
    %c0_61 = arith.constant 0 : index
    %209 = vector.load %arg1[%c8, %c0_60, %c0_61] : memref<16x4x128xbf16, #tpu.memory_space<vmem>>, vector<1x4x128xbf16>
    %210 = vector.shape_cast %209 : vector<1x4x128xbf16> to vector<4x128xbf16>
    %cst_62 = arith.constant dense<0.000000e+00> : vector<8x128xf32>
    %211 = tpu.matmul %9, %210, %cst_62 {dimension_numbers = #tpu.dot_dimension_numbers<[1], [0], [0], [1], [0, 0, 1, 1], [], []>} : vector<8x4xbf16>, vector<4x128xbf16>, vector<8x128xf32> -> vector<8x128xf32>
    %212 = vector.broadcast %208 : i32 to vector<8x1xi32>
    %213 = arith.cmpi slt, %212, %5 : vector<8x1xi32>
    %214 = arith.extui %213 : vector<8x1xi1> to vector<8x1xi32>
    %215 = arith.sitofp %214 : vector<8x1xi32> to vector<8x1xf32>
    %216 = vector.broadcast %11 : vector<8x1xf32> to vector<8x128xf32>
    %217 = arith.mulf %216, %211 : vector<8x128xf32>
    %cst_63 = arith.constant 0xFF800000 : f32
    %218 = vector.shape_cast %213 : vector<8x1xi1> to vector<8x1xi1>
    %219 = vector.broadcast %218 : vector<8x1xi1> to vector<8x128xi1>
    %220 = vector.broadcast %cst_63 : f32 to vector<8x128xf32>
    %221 = arith.select %219, %217, %220 : vector<8x128xi1>, vector<8x128xf32>
    %222 = arith.maximumf %198, %221 : vector<8x128xf32>
    %223 = vector.broadcast %215 : vector<8x1xf32> to vector<8x128xf32>
    %224 = arith.mulf %223, %211 : vector<8x128xf32>
    %225 = arith.addf %201, %224 : vector<8x128xf32>
    %226 = arith.mulf %211, %211 : vector<8x128xf32>
    %cst_64 = arith.constant dense<0.000000e+00> : vector<8xf32>
    %227 = vector.multi_reduction <add>, %226, %cst_64 [1] : vector<8x128xf32> to vector<8xf32>
    %228 = vector.shape_cast %227 : vector<8xf32> to vector<8x1xf32>
    %229 = arith.mulf %215, %228 : vector<8x1xf32>
    %230 = arith.addf %206, %229 : vector<8x1xf32>
    %c16_i32_65 = arith.constant 16 : i32
    %231 = arith.muli %arg0, %c16_i32_65 : i32
    %c9_i32 = arith.constant 9 : i32
    %232 = arith.addi %231, %c9_i32 : i32
    %c9 = arith.constant 9 : index
    %c0_66 = arith.constant 0 : index
    %c0_67 = arith.constant 0 : index
    %233 = vector.load %arg1[%c9, %c0_66, %c0_67] : memref<16x4x128xbf16, #tpu.memory_space<vmem>>, vector<1x4x128xbf16>
    %234 = vector.shape_cast %233 : vector<1x4x128xbf16> to vector<4x128xbf16>
    %cst_68 = arith.constant dense<0.000000e+00> : vector<8x128xf32>
    %235 = tpu.matmul %9, %234, %cst_68 {dimension_numbers = #tpu.dot_dimension_numbers<[1], [0], [0], [1], [0, 0, 1, 1], [], []>} : vector<8x4xbf16>, vector<4x128xbf16>, vector<8x128xf32> -> vector<8x128xf32>
    %236 = vector.broadcast %232 : i32 to vector<8x1xi32>
    %237 = arith.cmpi slt, %236, %5 : vector<8x1xi32>
    %238 = arith.extui %237 : vector<8x1xi1> to vector<8x1xi32>
    %239 = arith.sitofp %238 : vector<8x1xi32> to vector<8x1xf32>
    %240 = vector.broadcast %11 : vector<8x1xf32> to vector<8x128xf32>
    %241 = arith.mulf %240, %235 : vector<8x128xf32>
    %cst_69 = arith.constant 0xFF800000 : f32
    %242 = vector.shape_cast %237 : vector<8x1xi1> to vector<8x1xi1>
    %243 = vector.broadcast %242 : vector<8x1xi1> to vector<8x128xi1>
    %244 = vector.broadcast %cst_69 : f32 to vector<8x128xf32>
    %245 = arith.select %243, %241, %244 : vector<8x128xi1>, vector<8x128xf32>
    %246 = arith.maximumf %222, %245 : vector<8x128xf32>
    %247 = vector.broadcast %239 : vector<8x1xf32> to vector<8x128xf32>
    %248 = arith.mulf %247, %235 : vector<8x128xf32>
    %249 = arith.addf %225, %248 : vector<8x128xf32>
    %250 = arith.mulf %235, %235 : vector<8x128xf32>
    %cst_70 = arith.constant dense<0.000000e+00> : vector<8xf32>
    %251 = vector.multi_reduction <add>, %250, %cst_70 [1] : vector<8x128xf32> to vector<8xf32>
    %252 = vector.shape_cast %251 : vector<8xf32> to vector<8x1xf32>
    %253 = arith.mulf %239, %252 : vector<8x1xf32>
    %254 = arith.addf %230, %253 : vector<8x1xf32>
    %c16_i32_71 = arith.constant 16 : i32
    %255 = arith.muli %arg0, %c16_i32_71 : i32
    %c10_i32 = arith.constant 10 : i32
    %256 = arith.addi %255, %c10_i32 : i32
    %c10 = arith.constant 10 : index
    %c0_72 = arith.constant 0 : index
    %c0_73 = arith.constant 0 : index
    %257 = vector.load %arg1[%c10, %c0_72, %c0_73] : memref<16x4x128xbf16, #tpu.memory_space<vmem>>, vector<1x4x128xbf16>
    %258 = vector.shape_cast %257 : vector<1x4x128xbf16> to vector<4x128xbf16>
    %cst_74 = arith.constant dense<0.000000e+00> : vector<8x128xf32>
    %259 = tpu.matmul %9, %258, %cst_74 {dimension_numbers = #tpu.dot_dimension_numbers<[1], [0], [0], [1], [0, 0, 1, 1], [], []>} : vector<8x4xbf16>, vector<4x128xbf16>, vector<8x128xf32> -> vector<8x128xf32>
    %260 = vector.broadcast %256 : i32 to vector<8x1xi32>
    %261 = arith.cmpi slt, %260, %5 : vector<8x1xi32>
    %262 = arith.extui %261 : vector<8x1xi1> to vector<8x1xi32>
    %263 = arith.sitofp %262 : vector<8x1xi32> to vector<8x1xf32>
    %264 = vector.broadcast %11 : vector<8x1xf32> to vector<8x128xf32>
    %265 = arith.mulf %264, %259 : vector<8x128xf32>
    %cst_75 = arith.constant 0xFF800000 : f32
    %266 = vector.shape_cast %261 : vector<8x1xi1> to vector<8x1xi1>
    %267 = vector.broadcast %266 : vector<8x1xi1> to vector<8x128xi1>
    %268 = vector.broadcast %cst_75 : f32 to vector<8x128xf32>
    %269 = arith.select %267, %265, %268 : vector<8x128xi1>, vector<8x128xf32>
    %270 = arith.maximumf %246, %269 : vector<8x128xf32>
    %271 = vector.broadcast %263 : vector<8x1xf32> to vector<8x128xf32>
    %272 = arith.mulf %271, %259 : vector<8x128xf32>
    %273 = arith.addf %249, %272 : vector<8x128xf32>
    %274 = arith.mulf %259, %259 : vector<8x128xf32>
    %cst_76 = arith.constant dense<0.000000e+00> : vector<8xf32>
    %275 = vector.multi_reduction <add>, %274, %cst_76 [1] : vector<8x128xf32> to vector<8xf32>
    %276 = vector.shape_cast %275 : vector<8xf32> to vector<8x1xf32>
    %277 = arith.mulf %263, %276 : vector<8x1xf32>
    %278 = arith.addf %254, %277 : vector<8x1xf32>
    %c16_i32_77 = arith.constant 16 : i32
    %279 = arith.muli %arg0, %c16_i32_77 : i32
    %c11_i32 = arith.constant 11 : i32
    %280 = arith.addi %279, %c11_i32 : i32
    %c11 = arith.constant 11 : index
    %c0_78 = arith.constant 0 : index
    %c0_79 = arith.constant 0 : index
    %281 = vector.load %arg1[%c11, %c0_78, %c0_79] : memref<16x4x128xbf16, #tpu.memory_space<vmem>>, vector<1x4x128xbf16>
    %282 = vector.shape_cast %281 : vector<1x4x128xbf16> to vector<4x128xbf16>
    %cst_80 = arith.constant dense<0.000000e+00> : vector<8x128xf32>
    %283 = tpu.matmul %9, %282, %cst_80 {dimension_numbers = #tpu.dot_dimension_numbers<[1], [0], [0], [1], [0, 0, 1, 1], [], []>} : vector<8x4xbf16>, vector<4x128xbf16>, vector<8x128xf32> -> vector<8x128xf32>
    %284 = vector.broadcast %280 : i32 to vector<8x1xi32>
    %285 = arith.cmpi slt, %284, %5 : vector<8x1xi32>
    %286 = arith.extui %285 : vector<8x1xi1> to vector<8x1xi32>
    %287 = arith.sitofp %286 : vector<8x1xi32> to vector<8x1xf32>
    %288 = vector.broadcast %11 : vector<8x1xf32> to vector<8x128xf32>
    %289 = arith.mulf %288, %283 : vector<8x128xf32>
    %cst_81 = arith.constant 0xFF800000 : f32
    %290 = vector.shape_cast %285 : vector<8x1xi1> to vector<8x1xi1>
    %291 = vector.broadcast %290 : vector<8x1xi1> to vector<8x128xi1>
    %292 = vector.broadcast %cst_81 : f32 to vector<8x128xf32>
    %293 = arith.select %291, %289, %292 : vector<8x128xi1>, vector<8x128xf32>
    %294 = arith.maximumf %270, %293 : vector<8x128xf32>
    %295 = vector.broadcast %287 : vector<8x1xf32> to vector<8x128xf32>
    %296 = arith.mulf %295, %283 : vector<8x128xf32>
    %297 = arith.addf %273, %296 : vector<8x128xf32>
    %298 = arith.mulf %283, %283 : vector<8x128xf32>
    %cst_82 = arith.constant dense<0.000000e+00> : vector<8xf32>
    %299 = vector.multi_reduction <add>, %298, %cst_82 [1] : vector<8x128xf32> to vector<8xf32>
    %300 = vector.shape_cast %299 : vector<8xf32> to vector<8x1xf32>
    %301 = arith.mulf %287, %300 : vector<8x1xf32>
    %302 = arith.addf %278, %301 : vector<8x1xf32>
    %c16_i32_83 = arith.constant 16 : i32
    %303 = arith.muli %arg0, %c16_i32_83 : i32
    %c12_i32 = arith.constant 12 : i32
    %304 = arith.addi %303, %c12_i32 : i32
    %c12 = arith.constant 12 : index
    %c0_84 = arith.constant 0 : index
    %c0_85 = arith.constant 0 : index
    %305 = vector.load %arg1[%c12, %c0_84, %c0_85] : memref<16x4x128xbf16, #tpu.memory_space<vmem>>, vector<1x4x128xbf16>
    %306 = vector.shape_cast %305 : vector<1x4x128xbf16> to vector<4x128xbf16>
    %cst_86 = arith.constant dense<0.000000e+00> : vector<8x128xf32>
    %307 = tpu.matmul %9, %306, %cst_86 {dimension_numbers = #tpu.dot_dimension_numbers<[1], [0], [0], [1], [0, 0, 1, 1], [], []>} : vector<8x4xbf16>, vector<4x128xbf16>, vector<8x128xf32> -> vector<8x128xf32>
    %308 = vector.broadcast %304 : i32 to vector<8x1xi32>
    %309 = arith.cmpi slt, %308, %5 : vector<8x1xi32>
    %310 = arith.extui %309 : vector<8x1xi1> to vector<8x1xi32>
    %311 = arith.sitofp %310 : vector<8x1xi32> to vector<8x1xf32>
    %312 = vector.broadcast %11 : vector<8x1xf32> to vector<8x128xf32>
    %313 = arith.mulf %312, %307 : vector<8x128xf32>
    %cst_87 = arith.constant 0xFF800000 : f32
    %314 = vector.shape_cast %309 : vector<8x1xi1> to vector<8x1xi1>
    %315 = vector.broadcast %314 : vector<8x1xi1> to vector<8x128xi1>
    %316 = vector.broadcast %cst_87 : f32 to vector<8x128xf32>
    %317 = arith.select %315, %313, %316 : vector<8x128xi1>, vector<8x128xf32>
    %318 = arith.maximumf %294, %317 : vector<8x128xf32>
    %319 = vector.broadcast %311 : vector<8x1xf32> to vector<8x128xf32>
    %320 = arith.mulf %319, %307 : vector<8x128xf32>
    %321 = arith.addf %297, %320 : vector<8x128xf32>
    %322 = arith.mulf %307, %307 : vector<8x128xf32>
    %cst_88 = arith.constant dense<0.000000e+00> : vector<8xf32>
    %323 = vector.multi_reduction <add>, %322, %cst_88 [1] : vector<8x128xf32> to vector<8xf32>
    %324 = vector.shape_cast %323 : vector<8xf32> to vector<8x1xf32>
    %325 = arith.mulf %311, %324 : vector<8x1xf32>
    %326 = arith.addf %302, %325 : vector<8x1xf32>
    %c16_i32_89 = arith.constant 16 : i32
    %327 = arith.muli %arg0, %c16_i32_89 : i32
    %c13_i32 = arith.constant 13 : i32
    %328 = arith.addi %327, %c13_i32 : i32
    %c13 = arith.constant 13 : index
    %c0_90 = arith.constant 0 : index
    %c0_91 = arith.constant 0 : index
    %329 = vector.load %arg1[%c13, %c0_90, %c0_91] : memref<16x4x128xbf16, #tpu.memory_space<vmem>>, vector<1x4x128xbf16>
    %330 = vector.shape_cast %329 : vector<1x4x128xbf16> to vector<4x128xbf16>
    %cst_92 = arith.constant dense<0.000000e+00> : vector<8x128xf32>
    %331 = tpu.matmul %9, %330, %cst_92 {dimension_numbers = #tpu.dot_dimension_numbers<[1], [0], [0], [1], [0, 0, 1, 1], [], []>} : vector<8x4xbf16>, vector<4x128xbf16>, vector<8x128xf32> -> vector<8x128xf32>
    %332 = vector.broadcast %328 : i32 to vector<8x1xi32>
    %333 = arith.cmpi slt, %332, %5 : vector<8x1xi32>
    %334 = arith.extui %333 : vector<8x1xi1> to vector<8x1xi32>
    %335 = arith.sitofp %334 : vector<8x1xi32> to vector<8x1xf32>
    %336 = vector.broadcast %11 : vector<8x1xf32> to vector<8x128xf32>
    %337 = arith.mulf %336, %331 : vector<8x128xf32>
    %cst_93 = arith.constant 0xFF800000 : f32
    %338 = vector.shape_cast %333 : vector<8x1xi1> to vector<8x1xi1>
    %339 = vector.broadcast %338 : vector<8x1xi1> to vector<8x128xi1>
    %340 = vector.broadcast %cst_93 : f32 to vector<8x128xf32>
    %341 = arith.select %339, %337, %340 : vector<8x128xi1>, vector<8x128xf32>
    %342 = arith.maximumf %318, %341 : vector<8x128xf32>
    %343 = vector.broadcast %335 : vector<8x1xf32> to vector<8x128xf32>
    %344 = arith.mulf %343, %331 : vector<8x128xf32>
    %345 = arith.addf %321, %344 : vector<8x128xf32>
    %346 = arith.mulf %331, %331 : vector<8x128xf32>
    %cst_94 = arith.constant dense<0.000000e+00> : vector<8xf32>
    %347 = vector.multi_reduction <add>, %346, %cst_94 [1] : vector<8x128xf32> to vector<8xf32>
    %348 = vector.shape_cast %347 : vector<8xf32> to vector<8x1xf32>
    %349 = arith.mulf %335, %348 : vector<8x1xf32>
    %350 = arith.addf %326, %349 : vector<8x1xf32>
    %c16_i32_95 = arith.constant 16 : i32
    %351 = arith.muli %arg0, %c16_i32_95 : i32
    %c14_i32 = arith.constant 14 : i32
    %352 = arith.addi %351, %c14_i32 : i32
    %c14 = arith.constant 14 : index
    %c0_96 = arith.constant 0 : index
    %c0_97 = arith.constant 0 : index
    %353 = vector.load %arg1[%c14, %c0_96, %c0_97] : memref<16x4x128xbf16, #tpu.memory_space<vmem>>, vector<1x4x128xbf16>
    %354 = vector.shape_cast %353 : vector<1x4x128xbf16> to vector<4x128xbf16>
    %cst_98 = arith.constant dense<0.000000e+00> : vector<8x128xf32>
    %355 = tpu.matmul %9, %354, %cst_98 {dimension_numbers = #tpu.dot_dimension_numbers<[1], [0], [0], [1], [0, 0, 1, 1], [], []>} : vector<8x4xbf16>, vector<4x128xbf16>, vector<8x128xf32> -> vector<8x128xf32>
    %356 = vector.broadcast %352 : i32 to vector<8x1xi32>
    %357 = arith.cmpi slt, %356, %5 : vector<8x1xi32>
    %358 = arith.extui %357 : vector<8x1xi1> to vector<8x1xi32>
    %359 = arith.sitofp %358 : vector<8x1xi32> to vector<8x1xf32>
    %360 = vector.broadcast %11 : vector<8x1xf32> to vector<8x128xf32>
    %361 = arith.mulf %360, %355 : vector<8x128xf32>
    %cst_99 = arith.constant 0xFF800000 : f32
    %362 = vector.shape_cast %357 : vector<8x1xi1> to vector<8x1xi1>
    %363 = vector.broadcast %362 : vector<8x1xi1> to vector<8x128xi1>
    %364 = vector.broadcast %cst_99 : f32 to vector<8x128xf32>
    %365 = arith.select %363, %361, %364 : vector<8x128xi1>, vector<8x128xf32>
    %366 = arith.maximumf %342, %365 : vector<8x128xf32>
    %367 = vector.broadcast %359 : vector<8x1xf32> to vector<8x128xf32>
    %368 = arith.mulf %367, %355 : vector<8x128xf32>
    %369 = arith.addf %345, %368 : vector<8x128xf32>
    %370 = arith.mulf %355, %355 : vector<8x128xf32>
    %cst_100 = arith.constant dense<0.000000e+00> : vector<8xf32>
    %371 = vector.multi_reduction <add>, %370, %cst_100 [1] : vector<8x128xf32> to vector<8xf32>
    %372 = vector.shape_cast %371 : vector<8xf32> to vector<8x1xf32>
    %373 = arith.mulf %359, %372 : vector<8x1xf32>
    %374 = arith.addf %350, %373 : vector<8x1xf32>
    %c16_i32_101 = arith.constant 16 : i32
    %375 = arith.muli %arg0, %c16_i32_101 : i32
    %c15_i32 = arith.constant 15 : i32
    %376 = arith.addi %375, %c15_i32 : i32
    %c15 = arith.constant 15 : index
    %c0_102 = arith.constant 0 : index
    %c0_103 = arith.constant 0 : index
    %377 = vector.load %arg1[%c15, %c0_102, %c0_103] : memref<16x4x128xbf16, #tpu.memory_space<vmem>>, vector<1x4x128xbf16>
    %378 = vector.shape_cast %377 : vector<1x4x128xbf16> to vector<4x128xbf16>
    %cst_104 = arith.constant dense<0.000000e+00> : vector<8x128xf32>
    %379 = tpu.matmul %9, %378, %cst_104 {dimension_numbers = #tpu.dot_dimension_numbers<[1], [0], [0], [1], [0, 0, 1, 1], [], []>} : vector<8x4xbf16>, vector<4x128xbf16>, vector<8x128xf32> -> vector<8x128xf32>
    %380 = vector.broadcast %376 : i32 to vector<8x1xi32>
    %381 = arith.cmpi slt, %380, %5 : vector<8x1xi32>
    %382 = arith.extui %381 : vector<8x1xi1> to vector<8x1xi32>
    %383 = arith.sitofp %382 : vector<8x1xi32> to vector<8x1xf32>
    %384 = vector.broadcast %11 : vector<8x1xf32> to vector<8x128xf32>
    %385 = arith.mulf %384, %379 : vector<8x128xf32>
    %cst_105 = arith.constant 0xFF800000 : f32
    %386 = vector.shape_cast %381 : vector<8x1xi1> to vector<8x1xi1>
    %387 = vector.broadcast %386 : vector<8x1xi1> to vector<8x128xi1>
    %388 = vector.broadcast %cst_105 : f32 to vector<8x128xf32>
    %389 = arith.select %387, %385, %388 : vector<8x128xi1>, vector<8x128xf32>
    %390 = arith.maximumf %366, %389 : vector<8x128xf32>
    %391 = vector.broadcast %383 : vector<8x1xf32> to vector<8x128xf32>
    %392 = arith.mulf %391, %379 : vector<8x128xf32>
    %393 = arith.addf %369, %392 : vector<8x128xf32>
    %394 = arith.mulf %379, %379 : vector<8x128xf32>
    %cst_106 = arith.constant dense<0.000000e+00> : vector<8xf32>
    %395 = vector.multi_reduction <add>, %394, %cst_106 [1] : vector<8x128xf32> to vector<8xf32>
    %396 = vector.shape_cast %395 : vector<8xf32> to vector<8x1xf32>
    %397 = arith.mulf %383, %396 : vector<8x1xf32>
    %398 = arith.addf %374, %397 : vector<8x1xf32>
    %c0_107 = arith.constant 0 : index
    %c0_108 = arith.constant 0 : index
    %399 = vector.load %arg5[%c0_107, %c0_108] : memref<8x128xf32, #tpu.memory_space<vmem>>, vector<8x128xf32>
    %400 = arith.maximumf %399, %390 : vector<8x128xf32>
    %c0_109 = arith.constant 0 : index
    %c0_110 = arith.constant 0 : index
    %401 = vector.load %arg5[%c0_109, %c0_110] : memref<8x128xf32, #tpu.memory_space<vmem>>, vector<8x128xf32>
    tpu.vector_store %arg5[%c0_109, %c0_110], %400 {strides = array<i32>} : memref<8x128xf32, #tpu.memory_space<vmem>>, vector<8x128xf32>,
    %c0_111 = arith.constant 0 : index
    %c0_112 = arith.constant 0 : index
    %402 = vector.load %arg6[%c0_111, %c0_112] : memref<8x128xf32, #tpu.memory_space<vmem>>, vector<8x128xf32>
    %403 = arith.addf %402, %393 : vector<8x128xf32>
    %c0_113 = arith.constant 0 : index
    %c0_114 = arith.constant 0 : index
    %404 = vector.load %arg6[%c0_113, %c0_114] : memref<8x128xf32, #tpu.memory_space<vmem>>, vector<8x128xf32>
    tpu.vector_store %arg6[%c0_113, %c0_114], %403 {strides = array<i32>} : memref<8x128xf32, #tpu.memory_space<vmem>>, vector<8x128xf32>,
    %c0_115 = arith.constant 0 : index
    %c0_116 = arith.constant 0 : index
    %405 = vector.load %arg7[%c0_115, %c0_116] : memref<8x1xf32, #tpu.memory_space<vmem>>, vector<8x1xf32>
    %406 = arith.addf %405, %398 : vector<8x1xf32>
    %c0_117 = arith.constant 0 : index
    %c0_118 = arith.constant 0 : index
    %407 = vector.load %arg7[%c0_117, %c0_118] : memref<8x1xf32, #tpu.memory_space<vmem>>, vector<8x1xf32>
    tpu.vector_store %arg7[%c0_117, %c0_118], %406 {strides = array<i32>} : memref<8x1xf32, #tpu.memory_space<vmem>>, vector<8x1xf32>,
    %c0_i32_119 = arith.constant 0 : i32
    %408 = arith.cmpi eq, %arg0, %c0_i32_119 : i32
    %409 = arith.extui %408 : i1 to i32
    %c0_i32_120 = arith.constant 0 : i32
    %410 = arith.cmpi ne, %409, %c0_i32_120 : i32
    scf.if %410 {
      %c0_121 = arith.constant 0 : index
      %c0_122 = arith.constant 0 : index
      %c0_123 = arith.constant 0 : index
      %411 = vector.load %arg3[%c0_121, %c0_122, %c0_123] : memref<4x8x1xf32, #tpu.memory_space<vmem>>, vector<1x8x1xf32>
      %412 = vector.shape_cast %411 : vector<1x8x1xf32> to vector<8x1xf32>
      %c1_124 = arith.constant 1 : index
      %c0_125 = arith.constant 0 : index
      %c0_126 = arith.constant 0 : index
      %413 = vector.load %arg3[%c1_124, %c0_125, %c0_126] : memref<4x8x1xf32, #tpu.memory_space<vmem>>, vector<1x8x1xf32>
      %414 = vector.shape_cast %413 : vector<1x8x1xf32> to vector<8x1xf32>
      %c2_127 = arith.constant 2 : index
      %c0_128 = arith.constant 0 : index
      %c0_129 = arith.constant 0 : index
      %415 = vector.load %arg3[%c2_127, %c0_128, %c0_129] : memref<4x8x1xf32, #tpu.memory_space<vmem>>, vector<1x8x1xf32>
      %416 = vector.shape_cast %415 : vector<1x8x1xf32> to vector<8x1xf32>
      %417 = arith.sitofp %5 : vector<8x1xi32> to vector<8x1xf32>
      %cst_130 = arith.constant 3.200000e+01 : f32
      %418 = vector.broadcast %cst_130 : f32 to vector<8x1xf32>
      %419 = arith.mulf %417, %418 : vector<8x1xf32>
      %c0_131 = arith.constant 0 : index
      %c0_132 = arith.constant 0 : index
      %420 = vector.load %arg6[%c0_131, %c0_132] : memref<8x128xf32, #tpu.memory_space<vmem>>, vector<8x128xf32>
      %cst_133 = arith.constant dense<0.000000e+00> : vector<8xf32>
      %421 = vector.multi_reduction <add>, %420, %cst_133 [1] : vector<8x128xf32> to vector<8xf32>
      %422 = vector.shape_cast %421 : vector<8xf32> to vector<8x1xf32>
      %423 = arith.divf %422, %419 : vector<8x1xf32>
      %c0_134 = arith.constant 0 : index
      %c0_135 = arith.constant 0 : index
      %424 = vector.load %arg7[%c0_134, %c0_135] : memref<8x1xf32, #tpu.memory_space<vmem>>, vector<8x1xf32>
      %425 = arith.divf %424, %419 : vector<8x1xf32>
      %426 = arith.mulf %423, %423 : vector<8x1xf32>
      %427 = arith.subf %425, %426 : vector<8x1xf32>
      %cst_136 = arith.constant 0.000000e+00 : f32
      %428 = vector.broadcast %cst_136 : f32 to vector<8x1xf32>
      %429 = arith.maximumf %427, %428 : vector<8x1xf32>
      %cst_137 = arith.constant 9.99999974E-6 : f32
      %430 = vector.broadcast %cst_137 : f32 to vector<8x1xf32>
      %431 = arith.addf %429, %430 : vector<8x1xf32>
      %432 = math.rsqrt %431 : vector<8x1xf32>
      %433 = arith.mulf %412, %432 : vector<8x1xf32>
      %434 = arith.mulf %423, %433 : vector<8x1xf32>
      %435 = arith.subf %414, %434 : vector<8x1xf32>
      %436 = arith.mulf %11, %433 : vector<8x1xf32>
      %c0_138 = arith.constant 0 : index
      %c0_139 = arith.constant 0 : index
      %437 = vector.load %arg5[%c0_138, %c0_139] : memref<8x128xf32, #tpu.memory_space<vmem>>, vector<8x128xf32>
      %438 = vector.broadcast %436 : vector<8x1xf32> to vector<8x128xf32>
      %439 = arith.mulf %438, %437 : vector<8x128xf32>
      %440 = vector.broadcast %435 : vector<8x1xf32> to vector<8x128xf32>
      %441 = arith.addf %439, %440 : vector<8x128xf32>
      %c0_140 = arith.constant 0 : index
      %c0_141 = arith.constant 0 : index
      %442 = vector.load %arg6[%c0_140, %c0_141] : memref<8x128xf32, #tpu.memory_space<vmem>>, vector<8x128xf32>
      %443 = vector.broadcast %417 : vector<8x1xf32> to vector<8x128xf32>
      %444 = arith.divf %442, %443 : vector<8x128xf32>
      %445 = vector.broadcast %433 : vector<8x1xf32> to vector<8x128xf32>
      %446 = arith.mulf %445, %444 : vector<8x128xf32>
      %447 = vector.broadcast %435 : vector<8x1xf32> to vector<8x128xf32>
      %448 = arith.addf %446, %447 : vector<8x128xf32>
      %449 = vector.broadcast %416 : vector<8x1xf32> to vector<8x128xf32>
      %450 = arith.mulf %441, %449 : vector<8x128xf32>
      %cst_142 = arith.constant 1.000000e+00 : f32
      %451 = vector.broadcast %cst_142 : f32 to vector<8x1xf32>
      %452 = arith.subf %451, %416 : vector<8x1xf32>
      %453 = vector.broadcast %452 : vector<8x1xf32> to vector<8x128xf32>
      %454 = arith.mulf %448, %453 : vector<8x128xf32>
      %455 = arith.addf %450, %454 : vector<8x128xf32>
      %c0_143 = arith.constant 0 : index
      %c0_144 = arith.constant 0 : index
      %456 = vector.load %arg4[%c0_143, %c0_144] : memref<8x128xf32, #tpu.memory_space<vmem>>, vector<8x128xf32>
      tpu.vector_store %arg4[%c0_143, %c0_144], %455 {strides = array<i32>} : memref<8x128xf32, #tpu.memory_space<vmem>>, vector<8x128xf32>,
    } else {
    }
    return
  }
  func.func @transform_0(%arg0: i32) -> (i32, i32, i32) {
    %c0_i32 = arith.constant 0 : i32
    %c0_i32_0 = arith.constant 0 : i32
    %c0_i32_1 = arith.constant 0 : i32
    return %arg0, %c0_i32, %c0_i32_0 : i32, i32, i32
  }
  func.func @transform_1(%arg0: i32) -> (i32, i32) {
    %c0_i32 = arith.constant 0 : i32
    %c0_i32_0 = arith.constant 0 : i32
    %c0_i32_1 = arith.constant 0 : i32
    return %c0_i32, %c0_i32_0 : i32, i32
  }
  func.func @transform_2(%arg0: i32) -> (i32, i32, i32) {
    %c0_i32 = arith.constant 0 : i32
    %c0_i32_0 = arith.constant 0 : i32
    %c0_i32_1 = arith.constant 0 : i32
    %c0_i32_2 = arith.constant 0 : i32
    return %c0_i32, %c0_i32_0, %c0_i32_1 : i32, i32, i32
  }
  func.func @transform_3(%arg0: i32) -> (i32, i32) {
    %c0_i32 = arith.constant 0 : i32
    %c0_i32_0 = arith.constant 0 : i32
    %c0_i32_1 = arith.constant 0 : i32
    return %c0_i32, %c0_i32_0 : i32, i32
  }
}

</mosaic_0001>

<llo_original>
// kernel: conv_aspp_forward.1
$region0: #{conv_aspp_forward.1}
  #allocation0 [shape = 'u32[]', space=smem, size = 0x4, offset = 0x4, fixed_abs, tag = 'smem constant byte address 0x4 - core index']
  #allocation1 [shape = 'u32[72,128]{1,0:T(1,128)}', space=vmem, size = 0x9000, scoped, tag = 'internal scratch']
  #allocation2 [shape = 'f32[8,128]{1,0:T(8,128)}', space=vmem, size = 0x1000, scoped, tag = 'scratch operand']
  #allocation3 [shape = 'f32[8,128]{1,0:T(8,128)}', space=vmem, size = 0x1000, scoped, tag = 'scratch operand']
  #allocation4 [shape = 'f32[8,1]{1,0:T(8,128)}', space=vmem, size = 0x1000, scoped, tag = 'scratch operand']
  %s0 = inlined_call_operand.vmem [shape: bf16[16,4,128], index: 0, kind: input, shape index: {}]
  %s1 = inlined_call_operand.vmem [shape: bf16[8,4], index: 1, kind: input, shape index: {}]
  %s2 = inlined_call_operand.vmem [shape: f32[4,8,1], index: 2, kind: input, shape index: {}]
  %s3 = inlined_call_operand.vmem [shape: f32[8,128], index: 3, kind: output, shape index: {}]
  %s4 = sld [smem:[#allocation0]]
  $region30: #{conv_aspp_forward.1} parent=0
    _
  %s6 = ssub.s32 1, %s4
  %s7 = scalar_select 0, %s6, %s4
  // Predicated region
  $region2: #{conv_aspp_forward.1} parent=0 // pred_check
    _
  $region3: #{conv_aspp_forward.1} parent=0 // pred_check_branch
    %9 = sbr.rel (0) target = $region5
  $region4: #{conv_aspp_forward.1} parent=0 // pred_region
    _
  $region5: #{conv_aspp_forward.1} parent=0 // pred_fallthru
    _
  // Predicated region
  $region6: #{conv_aspp_forward.1} parent=0 // pred_check
    _
  $region7: #{conv_aspp_forward.1} parent=0 // pred_check_branch
    %11 = sbr.rel (0) target = $region9
  $region8: #{conv_aspp_forward.1} parent=0 // pred_region
    _
  $region9: #{conv_aspp_forward.1} parent=0 // pred_fallthru
    _
  // Predicated region
  $region10: #{conv_aspp_forward.1} parent=0 // pred_check
    _
  $region11: #{conv_aspp_forward.1} parent=0 // pred_check_branch
    %13 = sbr.rel (0) target = $region13
  $region12: #{conv_aspp_forward.1} parent=0 // pred_region
    _
  $region13: #{conv_aspp_forward.1} parent=0 // pred_fallthru
    _
  %v15 = vlaneseq
  %v16 = vshrl.u32 %v15, 7
  %vm17 = vcmp.lt.s32.totalorder %v16, 4
  %v18 = vsel %vm17, 16, 8
  %p19 = scmp.eq.s32.totalorder 0, 0
  // Predicated region
  $region14: #{conv_aspp_forward.1} parent=0 // pred_check
    %p20 = pneg %p19
  $region15: #{conv_aspp_forward.1} parent=0 // pred_check_branch
    %22 = sbr.rel (%p20) target = $region17
  $region16: #{conv_aspp_forward.1} parent=0 // pred_region
    %23 = vst [vmem:[#allocation2] sm:$0xff] -inf
    %24 = vst [vmem:[#allocation3] sm:$0xff] 0.0
    %vm25 = vcmask 7168
    %26 = vst.msk [vmem:[#allocation4] sm:$0xff] %vm25, 0.0
  $region17: #{conv_aspp_forward.1} parent=0 // pred_fallthru
    _
  %v27 = vld [vmem:[%s1] sm:$0xf]
  %s28 = scalar_lea.vmem %s2, 24
  %v29 = vld [vmem:[%s28] sm:$0xff]
  %s30 = smul.u32 0, 16
  %v31 = vld [vmem:[%s0] sm:$0x3]
  %vm32 = vcmask 31744
  %v34 = vsel %vm32, %v27, 0
  %vm36 = vcmask 1041408
  %v38 = vsel %vm36, %v31, 0
  %40 = vmatpush.bf16.msra.mxu0 0
  %41 = vmatpush.bf16.msra.mxu0 0
  %42 = vmatpush.bf16.msra.mxu0 0
  %43 = vmatpush.bf16.msra.mxu0 0
  %44 = vmatpush.bf16.msra.mxu0 0
  %45 = vmatpush.bf16.msra.mxu0 0
  %46 = vmatpush.bf16.msra.mxu0 0
  %47 = vmatpush.bf16.msra.mxu0 %v38
  %48 = vmatmul.bf16.gmra.mxu0 %v34
  %v49 = vpop.f32.mrf.mxu0
  %v50 = vadd.f32 0.0, %v49
  %v51 = vpop.f32.mrf.mxu0
  %52 = vdwg.mxu0
  %v53 = vstv %s30
  %vm54 = vcmp.lt.s32.totalorder %v53, %v18
  %v55 = vsel %vm54, 1, 0
  %v56 = vcvt.s32.f32 %v55
  %58 = vset.pattern.permute.xlu0 0
  %59 = vperm.xlu0 %58, %v29
  %v60 = vpop.permute.xlu0 %59
  %v62 = vmul.f32 %v60, %v50
  %vm63 = vcmp.eq.s32.totalorder %v55, 1
  %v64 = vsel %vm63, %v62, -inf
  %v65 = vmul.f32 %v56, %v50
  %v66 = vadd.f32 %v65, 0.0
  %v67 = vmul.f32 %v50, %v50
  %68 = vadd.xlane.f32.xlu0 %v67
  %v69 = vpop.xlane.xlu0 %68
  %v70 = vmul.f32 %v56, %v69
  %v71 = vadd.f32 %v70, 0.0
  %s72 = sadd.s32 %s30, 1
  %s73 = scalar_lea.vmem %s0, 2
  %v74 = vld [vmem:[%s73] sm:$0x3]
  %v76 = vsel %vm36, %v74, 0
  %78 = vmatpush.bf16.msra.mxu0 0
  %79 = vmatpush.bf16.msra.mxu0 0
  %80 = vmatpush.bf16.msra.mxu0 0
  %81 = vmatpush.bf16.msra.mxu0 0
  %82 = vmatpush.bf16.msra.mxu0 0
  %83 = vmatpush.bf16.msra.mxu0 0
  %84 = vmatpush.bf16.msra.mxu0 0
  %85 = vmatpush.bf16.msra.mxu0 %v76
  %86 = vmatmul.bf16.gmra.mxu0 %v34
  %v87 = vpop.f32.mrf.mxu0
  %v88 = vadd.f32 0.0, %v87
  %v89 = vpop.f32.mrf.mxu0
  %90 = vdwg.mxu0
  %v91 = vstv %s72
  %vm92 = vcmp.lt.s32.totalorder %v91, %v18
  %v93 = vsel %vm92, 1, 0
  %v94 = vcvt.s32.f32 %v93
  %v95 = vmul.f32 %v60, %v88
  %vm96 = vcmp.eq.s32.totalorder %v93, 1
  %v97 = vsel %vm96, %v95, -inf
  %v98 = vmax.f32 %v64, %v97
  %v99 = vmul.f32 %v94, %v88
  %v100 = vadd.f32 %v66, %v99
  %v101 = vmul.f32 %v88, %v88
  %102 = vadd.xlane.f32.xlu0 %v101
  %v103 = vpop.xlane.xlu0 %102
  %v104 = vmul.f32 %v94, %v103
  %v105 = vadd.f32 %v71, %v104
  %s106 = sadd.s32 %s30, 2
  %s107 = scalar_lea.vmem %s0, 4
  %v108 = vld [vmem:[%s107] sm:$0x3]
  %v110 = vsel %vm36, %v108, 0
  %112 = vmatpush.bf16.msra.mxu0 0
  %113 = vmatpush.bf16.msra.mxu0 0
  %114 = vmatpush.bf16.msra.mxu0 0
  %115 = vmatpush.bf16.msra.mxu0 0
  %116 = vmatpush.bf16.msra.mxu0 0
  %117 = vmatpush.bf16.msra.mxu0 0
  %118 = vmatpush.bf16.msra.mxu0 0
  %119 = vmatpush.bf16.msra.mxu0 %v110
  %120 = vmatmul.bf16.gmra.mxu0 %v34
  %v121 = vpop.f32.mrf.mxu0
  %v122 = vadd.f32 0.0, %v121
  %v123 = vpop.f32.mrf.mxu0
  %124 = vdwg.mxu0
  %v125 = vstv %s106
  %vm126 = vcmp.lt.s32.totalorder %v125, %v18
  %v127 = vsel %vm126, 1, 0
  %v128 = vcvt.s32.f32 %v127
  %v129 = vmul.f32 %v60, %v122
  %vm130 = vcmp.eq.s32.totalorder %v127, 1
  %v131 = vsel %vm130, %v129, -inf
  %v132 = vmax.f32 %v98, %v131
  %v133 = vmul.f32 %v128, %v122
  %v134 = vadd.f32 %v100, %v133
  %v135 = vmul.f32 %v122, %v122
  %136 = vadd.xlane.f32.xlu0 %v135
  %v137 = vpop.xlane.xlu0 %136
  %v138 = vmul.f32 %v128, %v137
  %v139 = vadd.f32 %v105, %v138
  %s140 = sadd.s32 %s30, 3
  %s141 = scalar_lea.vmem %s0, 6
  %v142 = vld [vmem:[%s141] sm:$0x3]
  %v144 = vsel %vm36, %v142, 0
  %146 = vmatpush.bf16.msra.mxu0 0
  %147 = vmatpush.bf16.msra.mxu0 0
  %148 = vmatpush.bf16.msra.mxu0 0
  %149 = vmatpush.bf16.msra.mxu0 0
  %150 = vmatpush.bf16.msra.mxu0 0
  %151 = vmatpush.bf16.msra.mxu0 0
  %152 = vmatpush.bf16.msra.mxu0 0
  %153 = vmatpush.bf16.msra.mxu0 %v144
  %154 = vmatmul.bf16.gmra.mxu0 %v34
  %v155 = vpop.f32.mrf.mxu0
  %v156 = vadd.f32 0.0, %v155
  %v157 = vpop.f32.mrf.mxu0
  %158 = vdwg.mxu0
  %v159 = vstv %s140
  %vm160 = vcmp.lt.s32.totalorder %v159, %v18
  %v161 = vsel %vm160, 1, 0
  %v162 = vcvt.s32.f32 %v161
  %v163 = vmul.f32 %v60, %v156
  %vm164 = vcmp.eq.s32.totalorder %v161, 1
  %v165 = vsel %vm164, %v163, -inf
  %v166 = vmax.f32 %v132, %v165
  %v167 = vmul.f32 %v162, %v156
  %v168 = vadd.f32 %v134, %v167
  %v169 = vmul.f32 %v156, %v156
  %170 = vadd.xlane.f32.xlu0 %v169
  %v171 = vpop.xlane.xlu0 %170
  %v172 = vmul.f32 %v162, %v171
  %v173 = vadd.f32 %v139, %v172
  %s174 = sadd.s32 %s30, 4
  %s175 = scalar_lea.vmem %s0, 8
  %v176 = vld [vmem:[%s175] sm:$0x3]
  %v178 = vsel %vm36, %v176, 0
  %180 = vmatpush.bf16.msra.mxu0 0
  %181 = vmatpush.bf16.msra.mxu0 0
  %182 = vmatpush.bf16.msra.mxu0 0
  %183 = vmatpush.bf16.msra.mxu0 0
  %184 = vmatpush.bf16.msra.mxu0 0
  %185 = vmatpush.bf16.msra.mxu0 0
  %186 = vmatpush.bf16.msra.mxu0 0
  %187 = vmatpush.bf16.msra.mxu0 %v178
  %188 = vmatmul.bf16.gmra.mxu0 %v34
  %v189 = vpop.f32.mrf.mxu0
  %v190 = vadd.f32 0.0, %v189
  %v191 = vpop.f32.mrf.mxu0
  %192 = vdwg.mxu0
  %v193 = vstv %s174
  %vm194 = vcmp.lt.s32.totalorder %v193, %v18
  %v195 = vsel %vm194, 1, 0
  %v196 = vcvt.s32.f32 %v195
  %v197 = vmul.f32 %v60, %v190
  %vm198 = vcmp.eq.s32.totalorder %v195, 1
  %v199 = vsel %vm198, %v197, -inf
  %v200 = vmax.f32 %v166, %v199
  %v201 = vmul.f32 %v196, %v190
  %v202 = vadd.f32 %v168, %v201
  %v203 = vmul.f32 %v190, %v190
  %204 = vadd.xlane.f32.xlu0 %v203
  %v205 = vpop.xlane.xlu0 %204
  %v206 = vmul.f32 %v196, %v205
  %v207 = vadd.f32 %v173, %v206
  %s208 = sadd.s32 %s30, 5
  %s209 = scalar_lea.vmem %s0, 10
  %v210 = vld [vmem:[%s209] sm:$0x3]
  %v212 = vsel %vm36, %v210, 0
  %214 = vmatpush.bf16.msra.mxu0 0
  %215 = vmatpush.bf16.msra.mxu0 0
  %216 = vmatpush.bf16.msra.mxu0 0
  %217 = vmatpush.bf16.msra.mxu0 0
  %218 = vmatpush.bf16.msra.mxu0 0
  %219 = vmatpush.bf16.msra.mxu0 0
  %220 = vmatpush.bf16.msra.mxu0 0
  %221 = vmatpush.bf16.msra.mxu0 %v212
  %222 = vmatmul.bf16.gmra.mxu0 %v34
  %v223 = vpop.f32.mrf.mxu0
  %v224 = vadd.f32 0.0, %v223
  %v225 = vpop.f32.mrf.mxu0
  %226 = vdwg.mxu0
  %v227 = vstv %s208
  %vm228 = vcmp.lt.s32.totalorder %v227, %v18
  %v229 = vsel %vm228, 1, 0
  %v230 = vcvt.s32.f32 %v229
  %v231 = vmul.f32 %v60, %v224
  %vm232 = vcmp.eq.s32.totalorder %v229, 1
  %v233 = vsel %vm232, %v231, -inf
  %v234 = vmax.f32 %v200, %v233
  %v235 = vmul.f32 %v230, %v224
  %v236 = vadd.f32 %v202, %v235
  %v237 = vmul.f32 %v224, %v224
  %238 = vadd.xlane.f32.xlu0 %v237
  %v239 = vpop.xlane.xlu0 %238
  %v240 = vmul.f32 %v230, %v239
  %v241 = vadd.f32 %v207, %v240
  %s242 = sadd.s32 %s30, 6
  %s243 = scalar_lea.vmem %s0, 12
  %v244 = vld [vmem:[%s243] sm:$0x3]
  %v246 = vsel %vm36, %v244, 0
  %248 = vmatpush.bf16.msra.mxu0 0
  %249 = vmatpush.bf16.msra.mxu0 0
  %250 = vmatpush.bf16.msra.mxu0 0
  %251 = vmatpush.bf16.msra.mxu0 0
  %252 = vmatpush.bf16.msra.mxu0 0
  %253 = vmatpush.bf16.msra.mxu0 0
  %254 = vmatpush.bf16.msra.mxu0 0
  %255 = vmatpush.bf16.msra.mxu0 %v246
  %256 = vmatmul.bf16.gmra.mxu0 %v34
  %v257 = vpop.f32.mrf.mxu0
  %v258 = vadd.f32 0.0, %v257
  %v259 = vpop.f32.mrf.mxu0
  %260 = vdwg.mxu0
  %v261 = vstv %s242
  %vm262 = vcmp.lt.s32.totalorder %v261, %v18
  %v263 = vsel %vm262, 1, 0
  %v264 = vcvt.s32.f32 %v263
  %v265 = vmul.f32 %v60, %v258
  %vm266 = vcmp.eq.s32.totalorder %v263, 1
  %v267 = vsel %vm266, %v265, -inf
  %v268 = vmax.f32 %v234, %v267
  %v269 = vmul.f32 %v264, %v258
  %v270 = vadd.f32 %v236, %v269
  %v271 = vmul.f32 %v258, %v258
  %272 = vadd.xlane.f32.xlu0 %v271
  %v273 = vpop.xlane.xlu0 %272
  %v274 = vmul.f32 %v264, %v273
  %v275 = vadd.f32 %v241, %v274
  %s276 = sadd.s32 %s30, 7
  %s277 = scalar_lea.vmem %s0, 14
  %v278 = vld [vmem:[%s277] sm:$0x3]
  %v280 = vsel %vm36, %v278, 0
  %282 = vmatpush.bf16.msra.mxu0 0
  %283 = vmatpush.bf16.msra.mxu0 0
  %284 = vmatpush.bf16.msra.mxu0 0
  %285 = vmatpush.bf16.msra.mxu0 0
  %286 = vmatpush.bf16.msra.mxu0 0
  %287 = vmatpush.bf16.msra.mxu0 0
  %288 = vmatpush.bf16.msra.mxu0 0
  %289 = vmatpush.bf16.msra.mxu0 %v280
  %290 = vmatmul.bf16.gmra.mxu0 %v34
  %v291 = vpop.f32.mrf.mxu0
  %v292 = vadd.f32 0.0, %v291
  %v293 = vpop.f32.mrf.mxu0
  %294 = vdwg.mxu0
  %v295 = vstv %s276
  %vm296 = vcmp.lt.s32.totalorder %v295, %v18
  %v297 = vsel %vm296, 1, 0
  %v298 = vcvt.s32.f32 %v297
  %v299 = vmul.f32 %v60, %v292
  %vm300 = vcmp.eq.s32.totalorder %v297, 1
  %v301 = vsel %vm300, %v299, -inf
  %v302 = vmax.f32 %v268, %v301
  %v303 = vmul.f32 %v298, %v292
  %v304 = vadd.f32 %v270, %v303
  %v305 = vmul.f32 %v292, %v292
  %306 = vadd.xlane.f32.xlu0 %v305
  %v307 = vpop.xlane.xlu0 %306
  %v308 = vmul.f32 %v298, %v307
  %v309 = vadd.f32 %v275, %v308
  %s310 = sadd.s32 %s30, 8
  %s311 = scalar_lea.vmem %s0, 16
  %v312 = vld [vmem:[%s311] sm:$0x3]
  %v314 = vsel %vm36, %v312, 0
  %316 = vmatpush.bf16.msra.mxu0 0
  %317 = vmatpush.bf16.msra.mxu0 0
  %318 = vmatpush.bf16.msra.mxu0 0
  %319 = vmatpush.bf16.msra.mxu0 0
  %320 = vmatpush.bf16.msra.mxu0 0
  %321 = vmatpush.bf16.msra.mxu0 0
  %322 = vmatpush.bf16.msra.mxu0 0
  %323 = vmatpush.bf16.msra.mxu0 %v314
  %324 = vmatmul.bf16.gmra.mxu0 %v34
  %v325 = vpop.f32.mrf.mxu0
  %v326 = vadd.f32 0.0, %v325
  %v327 = vpop.f32.mrf.mxu0
  %328 = vdwg.mxu0
  %v329 = vstv %s310
  %vm330 = vcmp.lt.s32.totalorder %v329, %v18
  %v331 = vsel %vm330, 1, 0
  %v332 = vcvt.s32.f32 %v331
  %v333 = vmul.f32 %v60, %v326
  %vm334 = vcmp.eq.s32.totalorder %v331, 1
  %v335 = vsel %vm334, %v333, -inf
  %v336 = vmax.f32 %v302, %v335
  %v337 = vmul.f32 %v332, %v326
  %v338 = vadd.f32 %v304, %v337
  %v339 = vmul.f32 %v326, %v326
  %340 = vadd.xlane.f32.xlu0 %v339
  %v341 = vpop.xlane.xlu0 %340
  %v342 = vmul.f32 %v332, %v341
  %v343 = vadd.f32 %v309, %v342
  %s344 = sadd.s32 %s30, 9
  %s345 = scalar_lea.vmem %s0, 18
  %v346 = vld [vmem:[%s345] sm:$0x3]
  %v348 = vsel %vm36, %v346, 0
  %350 = vmatpush.bf16.msra.mxu0 0
  %351 = vmatpush.bf16.msra.mxu0 0
  %352 = vmatpush.bf16.msra.mxu0 0
  %353 = vmatpush.bf16.msra.mxu0 0
  %354 = vmatpush.bf16.msra.mxu0 0
  %355 = vmatpush.bf16.msra.mxu0 0
  %356 = vmatpush.bf16.msra.mxu0 0
  %357 = vmatpush.bf16.msra.mxu0 %v348
  %358 = vmatmul.bf16.gmra.mxu0 %v34
  %v359 = vpop.f32.mrf.mxu0
  %v360 = vadd.f32 0.0, %v359
  %v361 = vpop.f32.mrf.mxu0
  %362 = vdwg.mxu0
  %v363 = vstv %s344
  %vm364 = vcmp.lt.s32.totalorder %v363, %v18
  %v365 = vsel %vm364, 1, 0
  %v366 = vcvt.s32.f32 %v365
  %v367 = vmul.f32 %v60, %v360
  %vm368 = vcmp.eq.s32.totalorder %v365, 1
  %v369 = vsel %vm368, %v367, -inf
  %v370 = vmax.f32 %v336, %v369
  %v371 = vmul.f32 %v366, %v360
  %v372 = vadd.f32 %v338, %v371
  %v373 = vmul.f32 %v360, %v360
  %374 = vadd.xlane.f32.xlu0 %v373
  %v375 = vpop.xlane.xlu0 %374
  %v376 = vmul.f32 %v366, %v375
  %v377 = vadd.f32 %v343, %v376
  %s378 = sadd.s32 %s30, 10
  %s379 = scalar_lea.vmem %s0, 20
  %v380 = vld [vmem:[%s379] sm:$0x3]
  %v382 = vsel %vm36, %v380, 0
  %384 = vmatpush.bf16.msra.mxu0 0
  %385 = vmatpush.bf16.msra.mxu0 0
  %386 = vmatpush.bf16.msra.mxu0 0
  %387 = vmatpush.bf16.msra.mxu0 0
  %388 = vmatpush.bf16.msra.mxu0 0
  %389 = vmatpush.bf16.msra.mxu0 0
  %390 = vmatpush.bf16.msra.mxu0 0
  %391 = vmatpush.bf16.msra.mxu0 %v382
  %392 = vmatmul.bf16.gmra.mxu0 %v34
  %v393 = vpop.f32.mrf.mxu0
  %v394 = vadd.f32 0.0, %v393
  %v395 = vpop.f32.mrf.mxu0
  %396 = vdwg.mxu0
  %v397 = vstv %s378
  %vm398 = vcmp.lt.s32.totalorder %v397, %v18
  %v399 = vsel %vm398, 1, 0
  %v400 = vcvt.s32.f32 %v399
  %v401 = vmul.f32 %v60, %v394
  %vm402 = vcmp.eq.s32.totalorder %v399, 1
  %v403 = vsel %vm402, %v401, -inf
  %v404 = vmax.f32 %v370, %v403
  %v405 = vmul.f32 %v400, %v394
  %v406 = vadd.f32 %v372, %v405
  %v407 = vmul.f32 %v394, %v394
  %408 = vadd.xlane.f32.xlu0 %v407
  %v409 = vpop.xlane.xlu0 %408
  %v410 = vmul.f32 %v400, %v409
  %v411 = vadd.f32 %v377, %v410
  %s412 = sadd.s32 %s30, 11
  %s413 = scalar_lea.vmem %s0, 22
  %v414 = vld [vmem:[%s413] sm:$0x3]
  %v416 = vsel %vm36, %v414, 0
  %418 = vmatpush.bf16.msra.mxu0 0
  %419 = vmatpush.bf16.msra.mxu0 0
  %420 = vmatpush.bf16.msra.mxu0 0
  %421 = vmatpush.bf16.msra.mxu0 0
  %422 = vmatpush.bf16.msra.mxu0 0
  %423 = vmatpush.bf16.msra.mxu0 0
  %424 = vmatpush.bf16.msra.mxu0 0
  %425 = vmatpush.bf16.msra.mxu0 %v416
  %426 = vmatmul.bf16.gmra.mxu0 %v34
  %v427 = vpop.f32.mrf.mxu0
  %v428 = vadd.f32 0.0, %v427
  %v429 = vpop.f32.mrf.mxu0
  %430 = vdwg.mxu0
  %v431 = vstv %s412
  %vm432 = vcmp.lt.s32.totalorder %v431, %v18
  %v433 = vsel %vm432, 1, 0
  %v434 = vcvt.s32.f32 %v433
  %v435 = vmul.f32 %v60, %v428
  %vm436 = vcmp.eq.s32.totalorder %v433, 1
  %v437 = vsel %vm436, %v435, -inf
  %v438 = vmax.f32 %v404, %v437
  %v439 = vmul.f32 %v434, %v428
  %v440 = vadd.f32 %v406, %v439
  %v441 = vmul.f32 %v428, %v428
  %442 = vadd.xlane.f32.xlu0 %v441
  %v443 = vpop.xlane.xlu0 %442
  %v444 = vmul.f32 %v434, %v443
  %v445 = vadd.f32 %v411, %v444
  %s446 = sadd.s32 %s30, 12
  %s447 = scalar_lea.vmem %s0, 24
  %v448 = vld [vmem:[%s447] sm:$0x3]
  %v450 = vsel %vm36, %v448, 0
  %452 = vmatpush.bf16.msra.mxu0 0
  %453 = vmatpush.bf16.msra.mxu0 0
  %454 = vmatpush.bf16.msra.mxu0 0
  %455 = vmatpush.bf16.msra.mxu0 0
  %456 = vmatpush.bf16.msra.mxu0 0
  %457 = vmatpush.bf16.msra.mxu0 0
  %458 = vmatpush.bf16.msra.mxu0 0
  %459 = vmatpush.bf16.msra.mxu0 %v450
  %460 = vmatmul.bf16.gmra.mxu0 %v34
  %v461 = vpop.f32.mrf.mxu0
  %v462 = vadd.f32 0.0, %v461
  %v463 = vpop.f32.mrf.mxu0
  %464 = vdwg.mxu0
  %v465 = vstv %s446
  %vm466 = vcmp.lt.s32.totalorder %v465, %v18
  %v467 = vsel %vm466, 1, 0
  %v468 = vcvt.s32.f32 %v467
  %v469 = vmul.f32 %v60, %v462
  %vm470 = vcmp.eq.s32.totalorder %v467, 1
  %v471 = vsel %vm470, %v469, -inf
  %v472 = vmax.f32 %v438, %v471
  %v473 = vmul.f32 %v468, %v462
  %v474 = vadd.f32 %v440, %v473
  %v475 = vmul.f32 %v462, %v462
  %476 = vadd.xlane.f32.xlu0 %v475
  %v477 = vpop.xlane.xlu0 %476
  %v478 = vmul.f32 %v468, %v477
  %v479 = vadd.f32 %v445, %v478
  %s480 = sadd.s32 %s30, 13
  %s481 = scalar_lea.vmem %s0, 26
  %v482 = vld [vmem:[%s481] sm:$0x3]
  %v484 = vsel %vm36, %v482, 0
  %486 = vmatpush.bf16.msra.mxu0 0
  %487 = vmatpush.bf16.msra.mxu0 0
  %488 = vmatpush.bf16.msra.mxu0 0
  %489 = vmatpush.bf16.msra.mxu0 0
  %490 = vmatpush.bf16.msra.mxu0 0
  %491 = vmatpush.bf16.msra.mxu0 0
  %492 = vmatpush.bf16.msra.mxu0 0
  %493 = vmatpush.bf16.msra.mxu0 %v484
  %494 = vmatmul.bf16.gmra.mxu0 %v34
  %v495 = vpop.f32.mrf.mxu0
  %v496 = vadd.f32 0.0, %v495
  %v497 = vpop.f32.mrf.mxu0
  %498 = vdwg.mxu0
  %v499 = vstv %s480
  %vm500 = vcmp.lt.s32.totalorder %v499, %v18
  %v501 = vsel %vm500, 1, 0
  %v502 = vcvt.s32.f32 %v501
  %v503 = vmul.f32 %v60, %v496
  %vm504 = vcmp.eq.s32.totalorder %v501, 1
  %v505 = vsel %vm504, %v503, -inf
  %v506 = vmax.f32 %v472, %v505
  %v507 = vmul.f32 %v502, %v496
  %v508 = vadd.f32 %v474, %v507
  %v509 = vmul.f32 %v496, %v496
  %510 = vadd.xlane.f32.xlu0 %v509
  %v511 = vpop.xlane.xlu0 %510
  %v512 = vmul.f32 %v502, %v511
  %v513 = vadd.f32 %v479, %v512
  %s514 = sadd.s32 %s30, 14
  %s515 = scalar_lea.vmem %s0, 28
  %v516 = vld [vmem:[%s515] sm:$0x3]
  %v518 = vsel %vm36, %v516, 0
  %520 = vmatpush.bf16.msra.mxu0 0
  %521 = vmatpush.bf16.msra.mxu0 0
  %522 = vmatpush.bf16.msra.mxu0 0
  %523 = vmatpush.bf16.msra.mxu0 0
  %524 = vmatpush.bf16.msra.mxu0 0
  %525 = vmatpush.bf16.msra.mxu0 0
  %526 = vmatpush.bf16.msra.mxu0 0
  %527 = vmatpush.bf16.msra.mxu0 %v518
  %528 = vmatmul.bf16.gmra.mxu0 %v34
  %v529 = vpop.f32.mrf.mxu0
  %v530 = vadd.f32 0.0, %v529
  %v531 = vpop.f32.mrf.mxu0
  %532 = vdwg.mxu0
  %v533 = vstv %s514
  %vm534 = vcmp.lt.s32.totalorder %v533, %v18
  %v535 = vsel %vm534, 1, 0
  %v536 = vcvt.s32.f32 %v535
  %v537 = vmul.f32 %v60, %v530
  %vm538 = vcmp.eq.s32.totalorder %v535, 1
  %v539 = vsel %vm538, %v537, -inf
  %v540 = vmax.f32 %v506, %v539
  %v541 = vmul.f32 %v536, %v530
  %v542 = vadd.f32 %v508, %v541
  %v543 = vmul.f32 %v530, %v530
  %544 = vadd.xlane.f32.xlu0 %v543
  %v545 = vpop.xlane.xlu0 %544
  %v546 = vmul.f32 %v536, %v545
  %v547 = vadd.f32 %v513, %v546
  %s548 = sadd.s32 %s30, 15
  %s549 = scalar_lea.vmem %s0, 30
  %v550 = vld [vmem:[%s549] sm:$0x3]
  %v552 = vsel %vm36, %v550, 0
  %554 = vmatpush.bf16.msra.mxu0 0
  %555 = vmatpush.bf16.msra.mxu0 0
  %556 = vmatpush.bf16.msra.mxu0 0
  %557 = vmatpush.bf16.msra.mxu0 0
  %558 = vmatpush.bf16.msra.mxu0 0
  %559 = vmatpush.bf16.msra.mxu0 0
  %560 = vmatpush.bf16.msra.mxu0 0
  %561 = vmatpush.bf16.msra.mxu0 %v552
  %562 = vmatmul.bf16.gmra.mxu0 %v34
  %v563 = vpop.f32.mrf.mxu0
  %v564 = vadd.f32 0.0, %v563
  %v565 = vpop.f32.mrf.mxu0
  %566 = vdwg.mxu0
  %v567 = vstv %s548
  %vm568 = vcmp.lt.s32.totalorder %v567, %v18
  %v569 = vsel %vm568, 1, 0
  %v570 = vcvt.s32.f32 %v569
  %v571 = vmul.f32 %v60, %v564
  %vm572 = vcmp.eq.s32.totalorder %v569, 1
  %v573 = vsel %vm572, %v571, -inf
  %v574 = vmax.f32 %v540, %v573
  %v575 = vmul.f32 %v570, %v564
  %v576 = vadd.f32 %v542, %v575
  %v577 = vmul.f32 %v564, %v564
  %578 = vadd.xlane.f32.xlu0 %v577
  %v579 = vpop.xlane.xlu0 %578
  %v580 = vmul.f32 %v570, %v579
  %v581 = vadd.f32 %v547, %v580
  %v582 = vld [vmem:[#allocation2] sm:$0xff]
  %v583 = vmax.f32 %v582, %v574
  %584 = vst [vmem:[#allocation2] sm:$0xff] %v583
  %v585 = vld [vmem:[#allocation3] sm:$0xff]
  %v586 = vadd.f32 %v585, %v576
  %587 = vst [vmem:[#allocation3] sm:$0xff] %v586
  %v588 = vld [vmem:[#allocation4] sm:$0xff]
  %v589 = vadd.f32 %v588, %v581
  %vm590 = vcmask 7168
  %591 = vst.msk [vmem:[#allocation4] sm:$0xff] %vm590, %v589
  // Predicated region
  $region18: #{conv_aspp_forward.1} parent=0 // pred_check
    %p592 = pneg %p19
  $region19: #{conv_aspp_forward.1} parent=0 // pred_check_branch
    %594 = sbr.rel (%p592) target = $region21
  $region20: #{conv_aspp_forward.1} parent=0 // pred_region
    %v595 = vld [vmem:[%s2] sm:$0xff]
    %s596 = scalar_lea.vmem %s2, 8
    %v597 = vld [vmem:[%s596] sm:$0xff]
    %s598 = scalar_lea.vmem %s2, 16
    %v599 = vld [vmem:[%s598] sm:$0xff]
    %v600 = vcvt.s32.f32 %v18
    %v601 = vmul.f32 %v600, 32.0
    %v602 = vld [vmem:[#allocation3] sm:$0xff]
    %603 = vadd.xlane.f32.xlu0 %v602
    %v604 = vpop.xlane.xlu0 %603
    %v605 = vrcp.pop %v601
    %v606 = vmul.f32 %v601, %v605
    %v607 = vsub.f32 1.0, %v606
    %v608 = vmul.f32 %v605, %v607
    %v609 = vadd.f32 %v605, %v608
    %vm610 = vweird.f32 %v601
    %vm611 = vweird.f32 %v605
    %vm612 = vmor %vm610, %vm611
    %v613 = vsel %vm612, %v605, %v609
    %v614 = vand.u32 2147483647, %v601
    %vm615 = vcmp.eq.f32.partialorder %v614, 8.507059e+37
    %v616 = vand.u32 %v601, 2147483648
    %v617 = vor.u32 1.1754944e-38, %v616
    %v618 = vsel %vm615, %v617, %v613
    %v619 = vmul.f32 %v604, %v618
    %v620 = vld [vmem:[#allocation4] sm:$0xff]
    %v621 = vmul.f32 %v620, %v618
    %v622 = vmul.f32 %v619, %v619
    %v623 = vsub.f32 %v621, %v622
    %v624 = vmax.f32 %v623, 0.0
    %v625 = vadd.f32 %v624, 1e-05
    %v626 = vrsqrt.pop %v625
    %v627 = vmul.f32 %v626, %v625
    %v628 = vmul.f32 %v627, %v626
    %v629 = vmul.f32 0.5, %v628
    %v630 = vsub.f32 1.5, %v629
    %v631 = vmul.f32 %v626, %v630
    %vm632 = vweird.f32 %v625
    %vm633 = vweird.f32 %v626
    %vm634 = vmor %vm632, %vm633
    %v635 = vsel %vm634, %v626, %v631
    %v636 = vmul.f32 %v595, %v635
    %v637 = vmul.f32 %v619, %v636
    %v638 = vsub.f32 %v597, %v637
    %v639 = vmul.f32 %v29, %v636
    %v640 = vld [vmem:[#allocation2] sm:$0xff]
    %642 = vset.pattern.permute.xlu0 0
    %643 = vperm.xlu0 %642, %v639
    %v644 = vpop.permute.xlu0 %643
    %v646 = vmul.f32 %v644, %v640
    %648 = vset.pattern.permute.xlu0 0
    %649 = vperm.xlu0 %648, %v638
    %v650 = vpop.permute.xlu0 %649
    %v652 = vadd.f32 %v646, %v650
    %v653 = vrcp.pop %v600
    %v654 = vmul.f32 %v600, %v653
    %v655 = vsub.f32 1.0, %v654
    %v656 = vmul.f32 %v653, %v655
    %v657 = vadd.f32 %v653, %v656
    %vm658 = vweird.f32 %v600
    %vm659 = vweird.f32 %v653
    %vm660 = vmor %vm658, %vm659
    %v661 = vsel %vm660, %v653, %v657
    %v662 = vand.u32 2147483647, %v600
    %vm663 = vcmp.eq.f32.partialorder %v662, 8.507059e+37
    %v664 = vand.u32 %v600, 2147483648
    %v665 = vor.u32 1.1754944e-38, %v664
    %v666 = vsel %vm663, %v665, %v661
    %v667 = vmul.f32 %v602, %v666
    %669 = vset.pattern.permute.xlu0 0
    %670 = vperm.xlu0 %669, %v636
    %v671 = vpop.permute.xlu0 %670
    %v673 = vmul.f32 %v671, %v667
    %v674 = vadd.f32 %v673, %v650
    %676 = vset.pattern.permute.xlu0 0
    %677 = vperm.xlu0 %676, %v599
    %v678 = vpop.permute.xlu0 %677
    %v680 = vmul.f32 %v652, %v678
    %v681 = vsub.f32 1.0, %v599
    %683 = vset.pattern.permute.xlu0 0
    %684 = vperm.xlu0 %683, %v681
    %v685 = vpop.permute.xlu0 %684
    %v687 = vmul.f32 %v674, %v685
    %v688 = vadd.f32 %v680, %v687
    %689 = vst [vmem:[%s3] sm:$0xff] %v688
  $region21: #{conv_aspp_forward.1} parent=0 // pred_fallthru
    _
  // Predicated region
  $region22: #{conv_aspp_forward.1} parent=0 // pred_check
    _
  $region23: #{conv_aspp_forward.1} parent=0 // pred_check_branch
    %691 = sbr.rel (0) target = $region25
  $region24: #{conv_aspp_forward.1} parent=0 // pred_region
    _
  $region25: #{conv_aspp_forward.1} parent=0 // pred_fallthru
    _
  // Predicated region
  $region26: #{conv_aspp_forward.1} parent=0 // pred_check
    _
  $region27: #{conv_aspp_forward.1} parent=0 // pred_check_branch
    %693 = sbr.rel (0) target = $region29
  $region28: #{conv_aspp_forward.1} parent=0 // pred_region
    _
  $region29: #{conv_aspp_forward.1} parent=0 // pred_fallthru
    _

</llo_original>
